<compile_context>
chip_gen: v7x
topology: tpu7x:2x2x1
jax: 0.10.0
libtpu: 0.0.40
codegen_flags: <defaults>
</compile_context>

<pallas_src>
import functools

import jax
import jax.numpy as jnp
from jax.experimental import pallas as pl
from jax.experimental.pallas import tpu as pltpu

# ---------------- small synthetic hyper-params (HIDDEN stands in for 768) ----------------
VOCAB = 50
HIDDEN = 32
NUM_HEADS = 2
HEAD_DIM = HIDDEN // NUM_HEADS
FFN = 64
NUM_LAYERS = 2
MAX_SEQ = 16
NUM_LABELS = 3
LN_EPS = 1e-12
LANE = 128                    # lane-dense padded width for QKV / FFN / classifier
OUT_PAD = LANE                # classifier output width (sliced to NUM_LABELS outside)
DOT_DTYPE = jnp.bfloat16      # MXU operand dtype (f32 accumulation everywhere)

# ---- packed small-vector row layout (single (VEC_ROWS, 128) f32 array) ----
_ROW_EG, _ROW_EB, _ROW_BP, _ROW_BFC, _ROW_BCLF = 0, 1, 2, 3, 4
_ROWS_BASE = 5
(_R_BQKV, _R_BO, _R_LN1G, _R_LN1B, _R_B1, _R_B2, _R_LN2G, _R_LN2B) = range(8)
_ROWS_PER_LAYER = 8
_N_ROWS = _ROWS_BASE + NUM_LAYERS * _ROWS_PER_LAYER
VEC_ROWS = ((_N_ROWS + 7) // 8) * 8          # pad row count to a sublane multiple


def _lrow(l, j):
    return _ROWS_BASE + l * _ROWS_PER_LAYER + j


def _layernorm(x, g, b, eps=LN_EPS):
    mu = jnp.mean(x, axis=-1, keepdims=True)
    var = jnp.mean((x - mu) ** 2, axis=-1, keepdims=True)
    return (x - mu) * jax.lax.rsqrt(var + eps) * g + b


def _erf_approx(x):
    # Abramowitz & Stegun 7.1.26 (|error| < 1.5e-7); built only from exp / divide / select,
    # all of which have guaranteed Mosaic lowerings (lax.erf is not relied upon).
    a1, a2, a3, a4, a5 = (0.254829592, -0.284496736, 1.421413741,
                          -1.453152027, 1.061405429)
    p = 0.3275911
    z = jnp.abs(x)
    t = 1.0 / (1.0 + p * z)
    poly = ((((a5 * t + a4) * t + a3) * t + a2) * t + a1) * t
    y = 1.0 - poly * jnp.exp(-z * z)
    return jnp.where(x < 0.0, -y, y)


def _gelu_exact(x):
    # erf-based GELU (matches PyTorch / HF BERT), not the tanh approximation.
    return 0.5 * x * (1.0 + _erf_approx(x * 0.7071067811865476))


# ------------------------------ fused Pallas kernel ------------------------------
def clf_fused_kernel(x_ref, mrow_ref, mcol_ref,
                     wqkv_ref, wo_ref, w1_ref, w2_ref,
                     wp_ref, wfc_ref, wclf_ref, vec_ref,
                     o_ref, ctx_ref, *, pooling_mode):
    """One grid program == one batch element; everything stays VMEM/vreg resident."""
    def vrow(r, width=HIDDEN):
        return vec_ref[r:r + 1, 0:width]            # (1, width) f32

    x = _layernorm(x_ref[0], vrow(_ROW_EG), vrow(_ROW_EB))     # (S, H) f32
    mask_row = mrow_ref[0]                                      # (1, S) f32 (key mask)
    mask_col = mcol_ref[0]                                      # (S, 1) f32 (token mask)
    bias = (1.0 - mask_row) * (-1e9)                            # broadcast over (S, S)

    for l in range(NUM_LAYERS):                                 # small static unroll
        xb = x.astype(DOT_DTYPE)
        # fused Q|K|V projection: one lane-dense (K=32, N=128) dot; attention scale folded in.
        qkv = jnp.dot(xb, wqkv_ref[l],
                      preferred_element_type=jnp.float32) + vrow(_lrow(l, _R_BQKV), LANE)
        for h in range(NUM_HEADS):                              # tiny static unroll (2 heads)
            q = qkv[:, h * HEAD_DIM:(h + 1) * HEAD_DIM].astype(DOT_DTYPE)
            k = qkv[:, HIDDEN + h * HEAD_DIM:HIDDEN + (h + 1) * HEAD_DIM].astype(DOT_DTYPE)
            v = qkv[:, 2 * HIDDEN + h * HEAD_DIM:2 * HIDDEN + (h + 1) * HEAD_DIM].astype(DOT_DTYPE)
            s = jax.lax.dot_general(q, k, (((1,), (1,)), ((), ())),
                                    preferred_element_type=jnp.float32) + bias   # (S, S)
            e = jnp.exp(s - jnp.max(s, axis=-1, keepdims=True))
            p = e * pl.reciprocal(jnp.sum(e, axis=-1, keepdims=True), approx=True)  # EUP divide
            ctx_ref[:, h * HEAD_DIM:(h + 1) * HEAD_DIM] = jnp.dot(
                p.astype(DOT_DTYPE), v, preferred_element_type=jnp.float32)
        # single output projection against the full Wo (K = HIDDEN, not per-head K=16)
        attn = jnp.dot(ctx_ref[...].astype(DOT_DTYPE), wo_ref[l],
                       preferred_element_type=jnp.float32) + vrow(_lrow(l, _R_BO))
        h1 = _layernorm(x + attn, vrow(_lrow(l, _R_LN1G)), vrow(_lrow(l, _R_LN1B)))
        ff = jnp.dot(h1.astype(DOT_DTYPE), w1_ref[l],
                     preferred_element_type=jnp.float32) + vrow(_lrow(l, _R_B1), LANE)
        ff = _gelu_exact(ff)
        ff = jnp.dot(ff.astype(DOT_DTYPE), w2_ref[l],
                     preferred_element_type=jnp.float32) + vrow(_lrow(l, _R_B2))
        x = _layernorm(h1 + ff, vrow(_lrow(l, _R_LN2G)), vrow(_lrow(l, _R_LN2B)))

    # ---- pooling + fc/ReLU + classifier ----
    if pooling_mode == 'cls':
        # BERT pooler: tanh dense on [CLS]
        sen = jnp.tanh(jnp.dot(x[0:1, :].astype(DOT_DTYPE), wp_ref[...],
                               preferred_element_type=jnp.float32) + vrow(_ROW_BP))
    elif pooling_mode == 'mean':
        sen = (jnp.sum(x * mask_col, axis=0, keepdims=True)
               / jnp.maximum(jnp.sum(mask_col, axis=0, keepdims=True), 1e-9))
    elif pooling_mode == 'max':
        sen = jnp.max(jnp.where(mask_col > 0, x, -1e9), axis=0, keepdims=True)
    else:
        # TODO(synk): 'first_last_mean'/'last2mean' need retained per-layer hidden states.
        raise NotImplementedError(pooling_mode)

    fc = jnp.maximum(jnp.dot(sen.astype(DOT_DTYPE), wfc_ref[...],
                             preferred_element_type=jnp.float32) + vrow(_ROW_BFC), 0.0)
    # lane-dense (1, 128) store; real logits live in the first NUM_LABELS columns
    o_ref[0] = jnp.dot(fc.astype(DOT_DTYPE), wclf_ref[...],
                       preferred_element_type=jnp.float32) + vrow(_ROW_BCLF, OUT_PAD)


# ------------------------------ parameters ------------------------------
def init_params(key):
    def dense(k, fan_in, fan_out):
        k1, k2 = jax.random.split(k)
        w = jax.random.normal(k1, (fan_in, fan_out), jnp.float32) * 0.02
        b = jax.random.normal(k2, (1, fan_out), jnp.float32) * 0.02
        return w, b

    keys = jax.random.split(key, 8 + NUM_LAYERS)
    p = {}
    p['word_emb'] = jax.random.normal(keys[0], (VOCAB, HIDDEN), jnp.float32) * 0.02
    p['pos_emb'] = jax.random.normal(keys[1], (MAX_SEQ, HIDDEN), jnp.float32) * 0.02
    p['type_emb'] = jax.random.normal(keys[2], (2, HIDDEN), jnp.float32) * 0.02
    p['emb_ln_g'] = jnp.ones((1, HIDDEN), jnp.float32)
    p['emb_ln_b'] = jnp.zeros((1, HIDDEN), jnp.float32)
    layers = []
    for i in range(NUM_LAYERS):
        lk = jax.random.split(keys[3 + i], 4)
        wqkv, bqkv = dense(lk[0], HIDDEN, 3 * HIDDEN)
        wo, bo = dense(lk[1], HIDDEN, HIDDEN)
        w1, b1 = dense(lk[2], HIDDEN, FFN)
        w2, b2 = dense(lk[3], FFN, HIDDEN)
        layers.append(dict(wqkv=wqkv, bqkv=bqkv, wo=wo, bo=bo,
                           w1=w1, b1=b1, w2=w2, b2=b2,
                           ln1g=jnp.ones((1, HIDDEN), jnp.float32),
                           ln1b=jnp.zeros((1, HIDDEN), jnp.float32),
                           ln2g=jnp.ones((1, HIDDEN), jnp.float32),
                           ln2b=jnp.zeros((1, HIDDEN), jnp.float32)))
    p['layers'] = layers
    p['wp'], p['bp'] = dense(keys[3 + NUM_LAYERS], HIDDEN, HIDDEN)          # BERT pooler
    p['wfc'], p['bfc'] = dense(keys[4 + NUM_LAYERS], HIDDEN, HIDDEN)        # self.fc (Linear+ReLU)
    p['wclf'], p['bclf'] = dense(keys[5 + NUM_LAYERS], HIDDEN, NUM_LABELS)  # self.clf
    return p


def prepare_fused_params(p):
    """One-time parameter prep (cached across forward calls — perf review item 1)."""
    scale = 1.0 / float(HEAD_DIM) ** 0.5

    def vec_row(v):
        v = jnp.ravel(v).astype(jnp.float32)
        return jnp.zeros((LANE,), jnp.float32).at[:v.shape[0]].set(v)

    def pad2(w, rows, cols):
        return jnp.zeros((rows, cols), jnp.float32).at[:w.shape[0], :w.shape[1]].set(w)

    vec_rows = [jnp.zeros((LANE,), jnp.float32)] * VEC_ROWS
    vec_rows[_ROW_EG] = vec_row(p['emb_ln_g'])
    vec_rows[_ROW_EB] = vec_row(p['emb_ln_b'])
    vec_rows[_ROW_BP] = vec_row(p['bp'])
    vec_rows[_ROW_BFC] = vec_row(p['bfc'])
    vec_rows[_ROW_BCLF] = vec_row(p['bclf'])

    wqkv, wo, w1, w2 = [], [], [], []
    for l, lyr in enumerate(p['layers']):
        wq = lyr['wqkv'][:, :HIDDEN] * scale            # fold attention scale into Q
        wk = lyr['wqkv'][:, HIDDEN:2 * HIDDEN]
        wv = lyr['wqkv'][:, 2 * HIDDEN:]
        wqkv.append(pad2(jnp.concatenate([wq, wk, wv], axis=1), HIDDEN, LANE))
        wo.append(lyr['wo'])
        w1.append(pad2(lyr['w1'], HIDDEN, LANE))
        w2.append(pad2(lyr['w2'], LANE, HIDDEN))
        bqkv = jnp.concatenate([lyr['bqkv'][:, :HIDDEN] * scale, lyr['bqkv'][:, HIDDEN:]], axis=1)
        vec_rows[_lrow(l, _R_BQKV)] = vec_row(bqkv)
        vec_rows[_lrow(l, _R_BO)] = vec_row(lyr['bo'])
        vec_rows[_lrow(l, _R_LN1G)] = vec_row(lyr['ln1g'])
        vec_rows[_lrow(l, _R_LN1B)] = vec_row(lyr['ln1b'])
        vec_rows[_lrow(l, _R_B1)] = vec_row(lyr['b1'])
        vec_rows[_lrow(l, _R_B2)] = vec_row(lyr['b2'])
        vec_rows[_lrow(l, _R_LN2G)] = vec_row(lyr['ln2g'])
        vec_rows[_lrow(l, _R_LN2B)] = vec_row(lyr['ln2b'])

    return {
        'word_emb': p['word_emb'], 'pos_emb': p['pos_emb'], 'type_emb': p['type_emb'],
        'wqkv': jnp.stack(wqkv).astype(DOT_DTYPE),       # (L, H, 128) bf16
        'wo': jnp.stack(wo).astype(DOT_DTYPE),           # (L, H, H)
        'w1': jnp.stack(w1).astype(DOT_DTYPE),           # (L, H, 128)
        'w2': jnp.stack(w2).astype(DOT_DTYPE),           # (L, 128, H)
        'wp': p['wp'].astype(DOT_DTYPE),
        'wfc': p['wfc'].astype(DOT_DTYPE),
        'wclf': pad2(p['wclf'], HIDDEN, OUT_PAD).astype(DOT_DTYPE),
        'vecs': jnp.stack(vec_rows),                     # (VEC_ROWS, 128) f32
    }


# ------------------------------ forward (CLFModel.forward) ------------------------------
@functools.partial(jax.jit, static_argnames=('pooling_mode',))
def clf_model_forward(fused, input_ids, attention_mask=None, token_type_ids=None,
                      pooling_mode='cls'):
    B, S = input_ids.shape
    if attention_mask is None:
        attention_mask = jnp.ones((B, S), jnp.float32)
    attention_mask = attention_mask.astype(jnp.float32)
    if token_type_ids is None:
        token_type_ids = jnp.zeros((B, S), jnp.int32)
    if pooling_mode not in ('cls', 'mean', 'max'):
        # TODO(synk): 'first_last_mean'/'last2mean' need retained per-layer hidden states.
        raise NotImplementedError(pooling_mode)

    # embedding-table gather is glue (no clean small-table Pallas gather)
    emb = (fused['word_emb'][input_ids]
           + fused['pos_emb'][:S][None, :, :]
           + fused['type_emb'][token_type_ids])                # (B, S, H)
    mask_row = attention_mask.reshape(B, 1, S)                 # key-mask layout
    mask_col = attention_mask.reshape(B, S, 1)                 # token-mask layout

    def w_spec(shape):
        return pl.BlockSpec(shape, lambda b: (0,) * len(shape))

    kernel = functools.partial(clf_fused_kernel, pooling_mode=pooling_mode)
    logits_pad = pl.pallas_call(
        kernel,
        out_shape=jax.ShapeDtypeStruct((B, 1, OUT_PAD), jnp.float32),
        grid=(B,),                                             # one program per batch element
        in_specs=[
            pl.BlockSpec((1, S, HIDDEN), lambda b: (b, 0, 0)),   # summed embeddings
            pl.BlockSpec((1, 1, S), lambda b: (b, 0, 0)),        # mask (1, S)
            pl.BlockSpec((1, S, 1), lambda b: (b, 0, 0)),        # mask (S, 1)
            w_spec((NUM_LAYERS, HIDDEN, LANE)),                  # fused QKV weights
            w_spec((NUM_LAYERS, HIDDEN, HIDDEN)),                # Wo
            w_spec((NUM_LAYERS, HIDDEN, LANE)),                  # W1 (padded)
            w_spec((NUM_LAYERS, LANE, HIDDEN)),                  # W2 (padded)
            w_spec((HIDDEN, HIDDEN)),                            # pooler
            w_spec((HIDDEN, HIDDEN)),                            # fc
            w_spec((HIDDEN, OUT_PAD)),                           # clf (padded)
            w_spec((VEC_ROWS, LANE)),                            # packed biases / LN vectors
        ],
        out_specs=pl.BlockSpec((1, 1, OUT_PAD), lambda b: (b, 0, 0)),
        scratch_shapes=[pltpu.VMEM((S, HIDDEN), jnp.float32)],   # per-head context assembly
        compiler_params=pltpu.CompilerParams(
            dimension_semantics=("parallel",)),                  # v7x: both TensorCores
    )(emb, mask_row, mask_col,
      fused['wqkv'], fused['wo'], fused['w1'], fused['w2'],
      fused['wp'], fused['wfc'], fused['wclf'], fused['vecs'])
    return logits_pad.reshape(B, OUT_PAD)[:, :NUM_LABELS]


# ------------------------------ pure-JAX reference ------------------------------
def reference_forward(params, input_ids, attention_mask, token_type_ids, pooling_mode,
                      dot_dtype=jnp.float32):
    """Reference CLFModel forward. dot_dtype=bf16 mirrors the kernel's MXU operand casting."""
    B, S = input_ids.shape
    mask = attention_mask.astype(jnp.float32)
    if token_type_ids is None:
        token_type_ids = jnp.zeros((B, S), jnp.int32)
    emb = (params['word_emb'][input_ids] + params['pos_emb'][:S][None, :, :]
           + params['type_emb'][token_type_ids])
    x = _layernorm(emb, params['emb_ln_g'], params['emb_ln_b'])
    bias = (1.0 - mask)[:, None, :] * (-1e9)
    scale = 1.0 / float(HEAD_DIM) ** 0.5

    def mm(a, w):
        return jnp.einsum('...h,hk->...k', a.astype(dot_dtype), w.astype(dot_dtype),
                          preferred_element_type=jnp.float32)

    for lyr in params['layers']:
        qkv = mm(x, lyr['wqkv']) + lyr['bqkv']
        ctxs = []
        for h in range(NUM_HEADS):
            q = qkv[..., h * HEAD_DIM:(h + 1) * HEAD_DIM]
            k = qkv[..., HIDDEN + h * HEAD_DIM:HIDDEN + (h + 1) * HEAD_DIM]
            v = qkv[..., 2 * HIDDEN + h * HEAD_DIM:2 * HIDDEN + (h + 1) * HEAD_DIM]
            s = jnp.einsum('bqd,bkd->bqk', q.astype(dot_dtype), k.astype(dot_dtype),
                           preferred_element_type=jnp.float32) * scale + bias
            p_attn = jax.nn.softmax(s, axis=-1)
            ctxs.append(jnp.einsum('bqk,bkd->bqd', p_attn.astype(dot_dtype), v.astype(dot_dtype),
                                   preferred_element_type=jnp.float32))
        ctx = jnp.concatenate(ctxs, axis=-1)
        attn = mm(ctx, lyr['wo']) + lyr['bo']
        h1 = _layernorm(x + attn, lyr['ln1g'], lyr['ln1b'])
        ff = jax.nn.gelu(mm(h1, lyr['w1']) + lyr['b1'], approximate=False)   # exact erf GELU
        ff = mm(ff, lyr['w2']) + lyr['b2']
        x = _layernorm(h1 + ff, lyr['ln2g'], lyr['ln2b'])

    if pooling_mode == 'cls':
        sen = jnp.tanh(mm(x[:, 0, :], params['wp']) + params['bp'])
    elif pooling_mode == 'mean':
        m = mask[:, :, None]
        sen = jnp.sum(x * m, axis=1) / jnp.maximum(jnp.sum(m, axis=1), 1e-9)
    elif pooling_mode == 'max':
        sen = jnp.max(jnp.where(mask[:, :, None] > 0, x, -1e9), axis=1)
    else:
        raise NotImplementedError(pooling_mode)
    fc = jnp.maximum(mm(sen, params['wfc']) + params['bfc'], 0.0)
    return mm(fc, params['wclf']) + params['bclf']


if __name__ == "__main__":
    key = jax.random.PRNGKey(0)
    pkey, dkey = jax.random.split(key)
    params = init_params(pkey)
    fused = prepare_fused_params(params)          # cached once, reused by every forward call

    B, S = 2, 8
    input_ids = jax.random.randint(dkey, (B, S), 0, VOCAB)
    attention_mask = jnp.array([[1, 1, 1, 1, 1, 1, 0, 0],
                                [1, 1, 1, 1, 1, 1, 1, 1]], jnp.float32)

    modes = ('cls', 'mean', 'max')
    outs = {m: clf_model_forward(fused, input_ids, attention_mask, pooling_mode=m)
            for m in modes}
    jax.block_until_ready(outs)

    for m in modes:
        ref_matched = reference_forward(params, input_ids, attention_mask, None, m,
                                        dot_dtype=DOT_DTYPE)
        ref_f32 = reference_forward(params, input_ids, attention_mask, None, m,
                                    dot_dtype=jnp.float32)
        assert outs[m].shape == (B, NUM_LABELS), m
        # slightly looser than before: kernel uses EUP approx-reciprocal softmax + A&S erf GELU
        assert jnp.allclose(outs[m], ref_matched, atol=5e-3, rtol=5e-3), f"{m} mismatch (matched)"
        assert jnp.allclose(outs[m], ref_f32, atol=1e-1), f"{m} mismatch (f32)"
    print("KERNEL_OK")
</pallas_src>

<mosaic_0001>
module attributes {stable_mosaic.version = 11 : i64} {
  func.func @clf_fused_kernel(%arg0: i32, %arg1: memref<1x8x32xf32, #tpu.memory_space<vmem>>, %arg2: memref<1x1x8xf32, #tpu.memory_space<vmem>>, %arg3: memref<1x8x1xf32, #tpu.memory_space<vmem>>, %arg4: memref<2x32x128xbf16, #tpu.memory_space<vmem>>, %arg5: memref<2x32x32xbf16, #tpu.memory_space<vmem>>, %arg6: memref<2x32x128xbf16, #tpu.memory_space<vmem>>, %arg7: memref<2x128x32xbf16, #tpu.memory_space<vmem>>, %arg8: memref<32x32xbf16, #tpu.memory_space<vmem>>, %arg9: memref<32x32xbf16, #tpu.memory_space<vmem>>, %arg10: memref<32x128xbf16, #tpu.memory_space<vmem>>, %arg11: memref<24x128xf32, #tpu.memory_space<vmem>>, %arg12: memref<1x1x128xf32, #tpu.memory_space<vmem>>, %arg13: memref<8x32xf32, #tpu.memory_space<vmem>>) attributes {dimension_semantics = [#tpu.dimension_semantics<parallel>], iteration_bounds = array<i64: 2>, scalar_prefetch = 0 : i64, scratch_operands = 1 : i64, tpu.core_type = #tpu.core_type<tc>, window_params = [{transform_indices = @transform_0, window_bounds = array<i64: 1, 8, 32>}, {transform_indices = @transform_1, window_bounds = array<i64: 1, 1, 8>}, {transform_indices = @transform_2, window_bounds = array<i64: 1, 8, 1>}, {pipeline_mode = #tpu.pipeline_mode<synchronous>, transform_indices = @transform_3, window_bounds = array<i64: 2, 32, 128>}, {pipeline_mode = #tpu.pipeline_mode<synchronous>, transform_indices = @transform_4, window_bounds = array<i64: 2, 32, 32>}, {pipeline_mode = #tpu.pipeline_mode<synchronous>, transform_indices = @transform_5, window_bounds = array<i64: 2, 32, 128>}, {pipeline_mode = #tpu.pipeline_mode<synchronous>, transform_indices = @transform_6, window_bounds = array<i64: 2, 128, 32>}, {pipeline_mode = #tpu.pipeline_mode<synchronous>, transform_indices = @transform_7, window_bounds = array<i64: 32, 32>}, {pipeline_mode = #tpu.pipeline_mode<synchronous>, transform_indices = @transform_8, window_bounds = array<i64: 32, 32>}, {pipeline_mode = #tpu.pipeline_mode<synchronous>, transform_indices = @transform_9, window_bounds = array<i64: 32, 128>}, {pipeline_mode = #tpu.pipeline_mode<synchronous>, transform_indices = @transform_10, window_bounds = array<i64: 24, 128>}, {transform_indices = @transform_11, window_bounds = array<i64: 1, 1, 128>}]} {
    %c0 = arith.constant 0 : index
    %c0_0 = arith.constant 0 : index
    %c0_1 = arith.constant 0 : index
    %0 = vector.load %arg1[%c0, %c0_0, %c0_1] : memref<1x8x32xf32, #tpu.memory_space<vmem>>, vector<1x8x32xf32>
    %1 = vector.shape_cast %0 : vector<1x8x32xf32> to vector<8x32xf32>
    %c0_2 = arith.constant 0 : index
    %c0_3 = arith.constant 0 : index
    %2 = vector.load %arg11[%c0_2, %c0_3] : memref<24x128xf32, #tpu.memory_space<vmem>>, vector<1x32xf32>
    %c1 = arith.constant 1 : index
    %c0_4 = arith.constant 0 : index
    %3 = vector.load %arg11[%c1, %c0_4] : memref<24x128xf32, #tpu.memory_space<vmem>>, vector<1x32xf32>
    %cst = arith.constant dense<0.000000e+00> : vector<8xf32>
    %4 = vector.multi_reduction <add>, %1, %cst [1] : vector<8x32xf32> to vector<8xf32>
    %5 = vector.shape_cast %4 : vector<8xf32> to vector<8x1xf32>
    %cst_5 = arith.constant 3.200000e+01 : f32
    %6 = vector.broadcast %cst_5 : f32 to vector<8x1xf32>
    %7 = arith.divf %5, %6 : vector<8x1xf32>
    %8 = vector.broadcast %7 : vector<8x1xf32> to vector<8x32xf32>
    %9 = arith.subf %1, %8 : vector<8x32xf32>
    %10 = arith.mulf %9, %9 : vector<8x32xf32>
    %cst_6 = arith.constant dense<0.000000e+00> : vector<8xf32>
    %11 = vector.multi_reduction <add>, %10, %cst_6 [1] : vector<8x32xf32> to vector<8xf32>
    %12 = vector.shape_cast %11 : vector<8xf32> to vector<8x1xf32>
    %cst_7 = arith.constant 3.200000e+01 : f32
    %13 = vector.broadcast %cst_7 : f32 to vector<8x1xf32>
    %14 = arith.divf %12, %13 : vector<8x1xf32>
    %15 = vector.broadcast %7 : vector<8x1xf32> to vector<8x32xf32>
    %16 = arith.subf %1, %15 : vector<8x32xf32>
    %cst_8 = arith.constant 9.99999996E-13 : f32
    %17 = vector.broadcast %cst_8 : f32 to vector<8x1xf32>
    %18 = arith.addf %14, %17 : vector<8x1xf32>
    %19 = math.rsqrt %18 : vector<8x1xf32>
    %20 = vector.broadcast %19 : vector<8x1xf32> to vector<8x32xf32>
    %21 = arith.mulf %16, %20 : vector<8x32xf32>
    %22 = vector.broadcast %2 : vector<1x32xf32> to vector<8x32xf32>
    %23 = arith.mulf %21, %22 : vector<8x32xf32>
    %24 = vector.broadcast %3 : vector<1x32xf32> to vector<8x32xf32>
    %25 = arith.addf %23, %24 : vector<8x32xf32>
    %c0_9 = arith.constant 0 : index
    %c0_10 = arith.constant 0 : index
    %c0_11 = arith.constant 0 : index
    %26 = vector.load %arg2[%c0_9, %c0_10, %c0_11] : memref<1x1x8xf32, #tpu.memory_space<vmem>>, vector<1x1x8xf32>
    %27 = vector.shape_cast %26 : vector<1x1x8xf32> to vector<1x8xf32>
    %cst_12 = arith.constant 1.000000e+00 : f32
    %28 = vector.broadcast %cst_12 : f32 to vector<1x8xf32>
    %29 = arith.subf %28, %27 : vector<1x8xf32>
    %cst_13 = arith.constant -1.000000e+09 : f32
    %30 = vector.broadcast %cst_13 : f32 to vector<1x8xf32>
    %31 = arith.mulf %29, %30 : vector<1x8xf32>
    %32 = arith.truncf %25 : vector<8x32xf32> to vector<8x32xbf16>
    %c0_14 = arith.constant 0 : index
    %c0_15 = arith.constant 0 : index
    %c0_16 = arith.constant 0 : index
    %33 = vector.load %arg4[%c0_14, %c0_15, %c0_16] : memref<2x32x128xbf16, #tpu.memory_space<vmem>>, vector<1x32x128xbf16>
    %34 = vector.shape_cast %33 : vector<1x32x128xbf16> to vector<32x128xbf16>
    %cst_17 = arith.constant dense<0.000000e+00> : vector<8x128xf32>
    %35 = tpu.matmul %32, %34, %cst_17 {dimension_numbers = #tpu.dot_dimension_numbers<[1], [0], [0], [1], [0, 0, 1, 1], [], []>} : vector<8x32xbf16>, vector<32x128xbf16>, vector<8x128xf32> -> vector<8x128xf32>
    %c5 = arith.constant 5 : index
    %c0_18 = arith.constant 0 : index
    %36 = vector.load %arg11[%c5, %c0_18] : memref<24x128xf32, #tpu.memory_space<vmem>>, vector<1x128xf32>
    %37 = vector.broadcast %36 : vector<1x128xf32> to vector<8x128xf32>
    %38 = arith.addf %35, %37 : vector<8x128xf32>
    %39 = vector.extract_strided_slice %38 {offsets = [0, 0], sizes = [8, 16], strides = [1, 1]} : vector<8x128xf32> to vector<8x16xf32>
    %40 = arith.truncf %39 : vector<8x16xf32> to vector<8x16xbf16>
    %41 = vector.extract_strided_slice %38 {offsets = [0, 32], sizes = [8, 16], strides = [1, 1]} : vector<8x128xf32> to vector<8x16xf32>
    %42 = arith.truncf %41 : vector<8x16xf32> to vector<8x16xbf16>
    %43 = vector.extract_strided_slice %38 {offsets = [0, 64], sizes = [8, 16], strides = [1, 1]} : vector<8x128xf32> to vector<8x16xf32>
    %44 = arith.truncf %43 : vector<8x16xf32> to vector<8x16xbf16>
    %cst_19 = arith.constant dense<0.000000e+00> : vector<8x8xf32>
    %45 = tpu.matmul %40, %42, %cst_19 {dimension_numbers = #tpu.dot_dimension_numbers<[1], [1], [0], [0], [0, 0, 1, 0], [], []>} : vector<8x16xbf16>, vector<8x16xbf16>, vector<8x8xf32> -> vector<8x8xf32>
    %46 = vector.broadcast %31 : vector<1x8xf32> to vector<8x8xf32>
    %47 = arith.addf %45, %46 : vector<8x8xf32>
    %cst_20 = arith.constant dense<0xFF800000> : vector<8xf32>
    %48 = vector.multi_reduction <maximumf>, %47, %cst_20 [1] : vector<8x8xf32> to vector<8xf32>
    %49 = vector.shape_cast %48 : vector<8xf32> to vector<8x1xf32>
    %50 = vector.broadcast %49 : vector<8x1xf32> to vector<8x8xf32>
    %51 = arith.subf %47, %50 : vector<8x8xf32>
    %52 = math.exp %51 : vector<8x8xf32>
    %cst_21 = arith.constant dense<0.000000e+00> : vector<8xf32>
    %53 = vector.multi_reduction <add>, %52, %cst_21 [1] : vector<8x8xf32> to vector<8xf32>
    %54 = vector.shape_cast %53 : vector<8xf32> to vector<8x1xf32>
    %55 = tpu.reciprocal %54 {approx = true} : vector<8x1xf32> -> vector<8x1xf32>
    %56 = vector.broadcast %55 : vector<8x1xf32> to vector<8x8xf32>
    %57 = arith.mulf %52, %56 : vector<8x8xf32>
    %58 = arith.truncf %57 : vector<8x8xf32> to vector<8x8xbf16>
    %cst_22 = arith.constant dense<0.000000e+00> : vector<8x16xf32>
    %59 = tpu.matmul %58, %44, %cst_22 {dimension_numbers = #tpu.dot_dimension_numbers<[1], [0], [0], [1], [0, 0, 1, 1], [], []>} : vector<8x8xbf16>, vector<8x16xbf16>, vector<8x16xf32> -> vector<8x16xf32>
    %c0_23 = arith.constant 0 : index
    %c0_24 = arith.constant 0 : index
    %60 = vector.load %arg13[%c0_23, %c0_24] : memref<8x32xf32, #tpu.memory_space<vmem>>, vector<8x16xf32>
    tpu.vector_store %arg13[%c0_23, %c0_24], %59 {strides = array<i32>} : memref<8x32xf32, #tpu.memory_space<vmem>>, vector<8x16xf32>,
    %61 = vector.extract_strided_slice %38 {offsets = [0, 16], sizes = [8, 16], strides = [1, 1]} : vector<8x128xf32> to vector<8x16xf32>
    %62 = arith.truncf %61 : vector<8x16xf32> to vector<8x16xbf16>
    %63 = vector.extract_strided_slice %38 {offsets = [0, 48], sizes = [8, 16], strides = [1, 1]} : vector<8x128xf32> to vector<8x16xf32>
    %64 = arith.truncf %63 : vector<8x16xf32> to vector<8x16xbf16>
    %65 = vector.extract_strided_slice %38 {offsets = [0, 80], sizes = [8, 16], strides = [1, 1]} : vector<8x128xf32> to vector<8x16xf32>
    %66 = arith.truncf %65 : vector<8x16xf32> to vector<8x16xbf16>
    %cst_25 = arith.constant dense<0.000000e+00> : vector<8x8xf32>
    %67 = tpu.matmul %62, %64, %cst_25 {dimension_numbers = #tpu.dot_dimension_numbers<[1], [1], [0], [0], [0, 0, 1, 0], [], []>} : vector<8x16xbf16>, vector<8x16xbf16>, vector<8x8xf32> -> vector<8x8xf32>
    %68 = vector.broadcast %31 : vector<1x8xf32> to vector<8x8xf32>
    %69 = arith.addf %67, %68 : vector<8x8xf32>
    %cst_26 = arith.constant dense<0xFF800000> : vector<8xf32>
    %70 = vector.multi_reduction <maximumf>, %69, %cst_26 [1] : vector<8x8xf32> to vector<8xf32>
    %71 = vector.shape_cast %70 : vector<8xf32> to vector<8x1xf32>
    %72 = vector.broadcast %71 : vector<8x1xf32> to vector<8x8xf32>
    %73 = arith.subf %69, %72 : vector<8x8xf32>
    %74 = math.exp %73 : vector<8x8xf32>
    %cst_27 = arith.constant dense<0.000000e+00> : vector<8xf32>
    %75 = vector.multi_reduction <add>, %74, %cst_27 [1] : vector<8x8xf32> to vector<8xf32>
    %76 = vector.shape_cast %75 : vector<8xf32> to vector<8x1xf32>
    %77 = tpu.reciprocal %76 {approx = true} : vector<8x1xf32> -> vector<8x1xf32>
    %78 = vector.broadcast %77 : vector<8x1xf32> to vector<8x8xf32>
    %79 = arith.mulf %74, %78 : vector<8x8xf32>
    %80 = arith.truncf %79 : vector<8x8xf32> to vector<8x8xbf16>
    %cst_28 = arith.constant dense<0.000000e+00> : vector<8x16xf32>
    %81 = tpu.matmul %80, %66, %cst_28 {dimension_numbers = #tpu.dot_dimension_numbers<[1], [0], [0], [1], [0, 0, 1, 1], [], []>} : vector<8x8xbf16>, vector<8x16xbf16>, vector<8x16xf32> -> vector<8x16xf32>
    %c0_29 = arith.constant 0 : index
    %c16 = arith.constant 16 : index
    %82 = vector.load %arg13[%c0_29, %c16] : memref<8x32xf32, #tpu.memory_space<vmem>>, vector<8x16xf32>
    tpu.vector_store %arg13[%c0_29, %c16], %81 {strides = array<i32>} : memref<8x32xf32, #tpu.memory_space<vmem>>, vector<8x16xf32>,
    %c0_30 = arith.constant 0 : index
    %c0_31 = arith.constant 0 : index
    %83 = vector.load %arg13[%c0_30, %c0_31] : memref<8x32xf32, #tpu.memory_space<vmem>>, vector<8x32xf32>
    %84 = arith.truncf %83 : vector<8x32xf32> to vector<8x32xbf16>
    %c0_32 = arith.constant 0 : index
    %c0_33 = arith.constant 0 : index
    %c0_34 = arith.constant 0 : index
    %85 = vector.load %arg5[%c0_32, %c0_33, %c0_34] : memref<2x32x32xbf16, #tpu.memory_space<vmem>>, vector<1x32x32xbf16>
    %86 = vector.shape_cast %85 : vector<1x32x32xbf16> to vector<32x32xbf16>
    %cst_35 = arith.constant dense<0.000000e+00> : vector<8x32xf32>
    %87 = tpu.matmul %84, %86, %cst_35 {dimension_numbers = #tpu.dot_dimension_numbers<[1], [0], [0], [1], [0, 0, 1, 1], [], []>} : vector<8x32xbf16>, vector<32x32xbf16>, vector<8x32xf32> -> vector<8x32xf32>
    %c6 = arith.constant 6 : index
    %c0_36 = arith.constant 0 : index
    %88 = vector.load %arg11[%c6, %c0_36] : memref<24x128xf32, #tpu.memory_space<vmem>>, vector<1x32xf32>
    %89 = vector.broadcast %88 : vector<1x32xf32> to vector<8x32xf32>
    %90 = arith.addf %87, %89 : vector<8x32xf32>
    %91 = arith.addf %25, %90 : vector<8x32xf32>
    %c7 = arith.constant 7 : index
    %c0_37 = arith.constant 0 : index
    %92 = vector.load %arg11[%c7, %c0_37] : memref<24x128xf32, #tpu.memory_space<vmem>>, vector<1x32xf32>
    %c8 = arith.constant 8 : index
    %c0_38 = arith.constant 0 : index
    %93 = vector.load %arg11[%c8, %c0_38] : memref<24x128xf32, #tpu.memory_space<vmem>>, vector<1x32xf32>
    %cst_39 = arith.constant dense<0.000000e+00> : vector<8xf32>
    %94 = vector.multi_reduction <add>, %91, %cst_39 [1] : vector<8x32xf32> to vector<8xf32>
    %95 = vector.shape_cast %94 : vector<8xf32> to vector<8x1xf32>
    %cst_40 = arith.constant 3.200000e+01 : f32
    %96 = vector.broadcast %cst_40 : f32 to vector<8x1xf32>
    %97 = arith.divf %95, %96 : vector<8x1xf32>
    %98 = vector.broadcast %97 : vector<8x1xf32> to vector<8x32xf32>
    %99 = arith.subf %91, %98 : vector<8x32xf32>
    %100 = arith.mulf %99, %99 : vector<8x32xf32>
    %cst_41 = arith.constant dense<0.000000e+00> : vector<8xf32>
    %101 = vector.multi_reduction <add>, %100, %cst_41 [1] : vector<8x32xf32> to vector<8xf32>
    %102 = vector.shape_cast %101 : vector<8xf32> to vector<8x1xf32>
    %cst_42 = arith.constant 3.200000e+01 : f32
    %103 = vector.broadcast %cst_42 : f32 to vector<8x1xf32>
    %104 = arith.divf %102, %103 : vector<8x1xf32>
    %105 = vector.broadcast %97 : vector<8x1xf32> to vector<8x32xf32>
    %106 = arith.subf %91, %105 : vector<8x32xf32>
    %cst_43 = arith.constant 9.99999996E-13 : f32
    %107 = vector.broadcast %cst_43 : f32 to vector<8x1xf32>
    %108 = arith.addf %104, %107 : vector<8x1xf32>
    %109 = math.rsqrt %108 : vector<8x1xf32>
    %110 = vector.broadcast %109 : vector<8x1xf32> to vector<8x32xf32>
    %111 = arith.mulf %106, %110 : vector<8x32xf32>
    %112 = vector.broadcast %92 : vector<1x32xf32> to vector<8x32xf32>
    %113 = arith.mulf %111, %112 : vector<8x32xf32>
    %114 = vector.broadcast %93 : vector<1x32xf32> to vector<8x32xf32>
    %115 = arith.addf %113, %114 : vector<8x32xf32>
    %116 = arith.truncf %115 : vector<8x32xf32> to vector<8x32xbf16>
    %c0_44 = arith.constant 0 : index
    %c0_45 = arith.constant 0 : index
    %c0_46 = arith.constant 0 : index
    %117 = vector.load %arg6[%c0_44, %c0_45, %c0_46] : memref<2x32x128xbf16, #tpu.memory_space<vmem>>, vector<1x32x128xbf16>
    %118 = vector.shape_cast %117 : vector<1x32x128xbf16> to vector<32x128xbf16>
    %cst_47 = arith.constant dense<0.000000e+00> : vector<8x128xf32>
    %119 = tpu.matmul %116, %118, %cst_47 {dimension_numbers = #tpu.dot_dimension_numbers<[1], [0], [0], [1], [0, 0, 1, 1], [], []>} : vector<8x32xbf16>, vector<32x128xbf16>, vector<8x128xf32> -> vector<8x128xf32>
    %c9 = arith.constant 9 : index
    %c0_48 = arith.constant 0 : index
    %120 = vector.load %arg11[%c9, %c0_48] : memref<24x128xf32, #tpu.memory_space<vmem>>, vector<1x128xf32>
    %121 = vector.broadcast %120 : vector<1x128xf32> to vector<8x128xf32>
    %122 = arith.addf %119, %121 : vector<8x128xf32>
    %cst_49 = arith.constant 5.000000e-01 : f32
    %123 = vector.broadcast %cst_49 : f32 to vector<8x128xf32>
    %124 = arith.mulf %123, %122 : vector<8x128xf32>
    %cst_50 = arith.constant 0.707106769 : f32
    %125 = vector.broadcast %cst_50 : f32 to vector<8x128xf32>
    %126 = arith.mulf %122, %125 : vector<8x128xf32>
    %127 = math.absf %126 : vector<8x128xf32>
    %cst_51 = arith.constant 0.327591091 : f32
    %128 = vector.broadcast %cst_51 : f32 to vector<8x128xf32>
    %129 = arith.mulf %128, %127 : vector<8x128xf32>
    %cst_52 = arith.constant 1.000000e+00 : f32
    %130 = vector.broadcast %cst_52 : f32 to vector<8x128xf32>
    %131 = arith.addf %130, %129 : vector<8x128xf32>
    %cst_53 = arith.constant 1.000000e+00 : f32
    %132 = vector.broadcast %cst_53 : f32 to vector<8x128xf32>
    %133 = arith.divf %132, %131 : vector<8x128xf32>
    %cst_54 = arith.constant 1.06140542 : f32
    %134 = vector.broadcast %cst_54 : f32 to vector<8x128xf32>
    %135 = arith.mulf %134, %133 : vector<8x128xf32>
    %cst_55 = arith.constant -1.45315206 : f32
    %136 = vector.broadcast %cst_55 : f32 to vector<8x128xf32>
    %137 = arith.addf %135, %136 : vector<8x128xf32>
    %138 = arith.mulf %137, %133 : vector<8x128xf32>
    %cst_56 = arith.constant 1.42141378 : f32
    %139 = vector.broadcast %cst_56 : f32 to vector<8x128xf32>
    %140 = arith.addf %138, %139 : vector<8x128xf32>
    %141 = arith.mulf %140, %133 : vector<8x128xf32>
    %cst_57 = arith.constant -0.284496725 : f32
    %142 = vector.broadcast %cst_57 : f32 to vector<8x128xf32>
    %143 = arith.addf %141, %142 : vector<8x128xf32>
    %144 = arith.mulf %143, %133 : vector<8x128xf32>
    %cst_58 = arith.constant 0.254829586 : f32
    %145 = vector.broadcast %cst_58 : f32 to vector<8x128xf32>
    %146 = arith.addf %144, %145 : vector<8x128xf32>
    %147 = arith.mulf %146, %133 : vector<8x128xf32>
    %cst_59 = arith.constant 0.000000e+00 : f32
    %148 = vector.broadcast %cst_59 : f32 to vector<8x128xf32>
    %149 = arith.subf %148, %127 : vector<8x128xf32>
    %150 = arith.mulf %149, %127 : vector<8x128xf32>
    %151 = math.exp %150 : vector<8x128xf32>
    %152 = arith.mulf %147, %151 : vector<8x128xf32>
    %cst_60 = arith.constant 1.000000e+00 : f32
    %153 = vector.broadcast %cst_60 : f32 to vector<8x128xf32>
    %154 = arith.subf %153, %152 : vector<8x128xf32>
    %cst_61 = arith.constant 0.000000e+00 : f32
    %155 = vector.broadcast %cst_61 : f32 to vector<8x128xf32>
    %156 = arith.cmpf olt, %126, %155 : vector<8x128xf32>
    %cst_62 = arith.constant 0.000000e+00 : f32
    %157 = vector.broadcast %cst_62 : f32 to vector<8x128xf32>
    %158 = arith.subf %157, %154 : vector<8x128xf32>
    %159 = arith.select %156, %158, %154 : vector<8x128xi1>, vector<8x128xf32>
    %cst_63 = arith.constant 1.000000e+00 : f32
    %160 = vector.broadcast %cst_63 : f32 to vector<8x128xf32>
    %161 = arith.addf %160, %159 : vector<8x128xf32>
    %162 = arith.mulf %124, %161 : vector<8x128xf32>
    %163 = arith.truncf %162 : vector<8x128xf32> to vector<8x128xbf16>
    %c0_64 = arith.constant 0 : index
    %c0_65 = arith.constant 0 : index
    %c0_66 = arith.constant 0 : index
    %164 = vector.load %arg7[%c0_64, %c0_65, %c0_66] : memref<2x128x32xbf16, #tpu.memory_space<vmem>>, vector<1x128x32xbf16>
    %165 = vector.shape_cast %164 : vector<1x128x32xbf16> to vector<128x32xbf16>
    %cst_67 = arith.constant dense<0.000000e+00> : vector<8x32xf32>
    %166 = tpu.matmul %163, %165, %cst_67 {dimension_numbers = #tpu.dot_dimension_numbers<[1], [0], [0], [1], [0, 0, 1, 1], [], []>} : vector<8x128xbf16>, vector<128x32xbf16>, vector<8x32xf32> -> vector<8x32xf32>
    %c10 = arith.constant 10 : index
    %c0_68 = arith.constant 0 : index
    %167 = vector.load %arg11[%c10, %c0_68] : memref<24x128xf32, #tpu.memory_space<vmem>>, vector<1x32xf32>
    %168 = vector.broadcast %167 : vector<1x32xf32> to vector<8x32xf32>
    %169 = arith.addf %166, %168 : vector<8x32xf32>
    %170 = arith.addf %115, %169 : vector<8x32xf32>
    %c11 = arith.constant 11 : index
    %c0_69 = arith.constant 0 : index
    %171 = vector.load %arg11[%c11, %c0_69] : memref<24x128xf32, #tpu.memory_space<vmem>>, vector<1x32xf32>
    %c12 = arith.constant 12 : index
    %c0_70 = arith.constant 0 : index
    %172 = vector.load %arg11[%c12, %c0_70] : memref<24x128xf32, #tpu.memory_space<vmem>>, vector<1x32xf32>
    %cst_71 = arith.constant dense<0.000000e+00> : vector<8xf32>
    %173 = vector.multi_reduction <add>, %170, %cst_71 [1] : vector<8x32xf32> to vector<8xf32>
    %174 = vector.shape_cast %173 : vector<8xf32> to vector<8x1xf32>
    %cst_72 = arith.constant 3.200000e+01 : f32
    %175 = vector.broadcast %cst_72 : f32 to vector<8x1xf32>
    %176 = arith.divf %174, %175 : vector<8x1xf32>
    %177 = vector.broadcast %176 : vector<8x1xf32> to vector<8x32xf32>
    %178 = arith.subf %170, %177 : vector<8x32xf32>
    %179 = arith.mulf %178, %178 : vector<8x32xf32>
    %cst_73 = arith.constant dense<0.000000e+00> : vector<8xf32>
    %180 = vector.multi_reduction <add>, %179, %cst_73 [1] : vector<8x32xf32> to vector<8xf32>
    %181 = vector.shape_cast %180 : vector<8xf32> to vector<8x1xf32>
    %cst_74 = arith.constant 3.200000e+01 : f32
    %182 = vector.broadcast %cst_74 : f32 to vector<8x1xf32>
    %183 = arith.divf %181, %182 : vector<8x1xf32>
    %184 = vector.broadcast %176 : vector<8x1xf32> to vector<8x32xf32>
    %185 = arith.subf %170, %184 : vector<8x32xf32>
    %cst_75 = arith.constant 9.99999996E-13 : f32
    %186 = vector.broadcast %cst_75 : f32 to vector<8x1xf32>
    %187 = arith.addf %183, %186 : vector<8x1xf32>
    %188 = math.rsqrt %187 : vector<8x1xf32>
    %189 = vector.broadcast %188 : vector<8x1xf32> to vector<8x32xf32>
    %190 = arith.mulf %185, %189 : vector<8x32xf32>
    %191 = vector.broadcast %171 : vector<1x32xf32> to vector<8x32xf32>
    %192 = arith.mulf %190, %191 : vector<8x32xf32>
    %193 = vector.broadcast %172 : vector<1x32xf32> to vector<8x32xf32>
    %194 = arith.addf %192, %193 : vector<8x32xf32>
    %195 = arith.truncf %194 : vector<8x32xf32> to vector<8x32xbf16>
    %c1_76 = arith.constant 1 : index
    %c0_77 = arith.constant 0 : index
    %c0_78 = arith.constant 0 : index
    %196 = vector.load %arg4[%c1_76, %c0_77, %c0_78] : memref<2x32x128xbf16, #tpu.memory_space<vmem>>, vector<1x32x128xbf16>
    %197 = vector.shape_cast %196 : vector<1x32x128xbf16> to vector<32x128xbf16>
    %cst_79 = arith.constant dense<0.000000e+00> : vector<8x128xf32>
    %198 = tpu.matmul %195, %197, %cst_79 {dimension_numbers = #tpu.dot_dimension_numbers<[1], [0], [0], [1], [0, 0, 1, 1], [], []>} : vector<8x32xbf16>, vector<32x128xbf16>, vector<8x128xf32> -> vector<8x128xf32>
    %c13 = arith.constant 13 : index
    %c0_80 = arith.constant 0 : index
    %199 = vector.load %arg11[%c13, %c0_80] : memref<24x128xf32, #tpu.memory_space<vmem>>, vector<1x128xf32>
    %200 = vector.broadcast %199 : vector<1x128xf32> to vector<8x128xf32>
    %201 = arith.addf %198, %200 : vector<8x128xf32>
    %202 = vector.extract_strided_slice %201 {offsets = [0, 0], sizes = [8, 16], strides = [1, 1]} : vector<8x128xf32> to vector<8x16xf32>
    %203 = arith.truncf %202 : vector<8x16xf32> to vector<8x16xbf16>
    %204 = vector.extract_strided_slice %201 {offsets = [0, 32], sizes = [8, 16], strides = [1, 1]} : vector<8x128xf32> to vector<8x16xf32>
    %205 = arith.truncf %204 : vector<8x16xf32> to vector<8x16xbf16>
    %206 = vector.extract_strided_slice %201 {offsets = [0, 64], sizes = [8, 16], strides = [1, 1]} : vector<8x128xf32> to vector<8x16xf32>
    %207 = arith.truncf %206 : vector<8x16xf32> to vector<8x16xbf16>
    %cst_81 = arith.constant dense<0.000000e+00> : vector<8x8xf32>
    %208 = tpu.matmul %203, %205, %cst_81 {dimension_numbers = #tpu.dot_dimension_numbers<[1], [1], [0], [0], [0, 0, 1, 0], [], []>} : vector<8x16xbf16>, vector<8x16xbf16>, vector<8x8xf32> -> vector<8x8xf32>
    %209 = vector.broadcast %31 : vector<1x8xf32> to vector<8x8xf32>
    %210 = arith.addf %208, %209 : vector<8x8xf32>
    %cst_82 = arith.constant dense<0xFF800000> : vector<8xf32>
    %211 = vector.multi_reduction <maximumf>, %210, %cst_82 [1] : vector<8x8xf32> to vector<8xf32>
    %212 = vector.shape_cast %211 : vector<8xf32> to vector<8x1xf32>
    %213 = vector.broadcast %212 : vector<8x1xf32> to vector<8x8xf32>
    %214 = arith.subf %210, %213 : vector<8x8xf32>
    %215 = math.exp %214 : vector<8x8xf32>
    %cst_83 = arith.constant dense<0.000000e+00> : vector<8xf32>
    %216 = vector.multi_reduction <add>, %215, %cst_83 [1] : vector<8x8xf32> to vector<8xf32>
    %217 = vector.shape_cast %216 : vector<8xf32> to vector<8x1xf32>
    %218 = tpu.reciprocal %217 {approx = true} : vector<8x1xf32> -> vector<8x1xf32>
    %219 = vector.broadcast %218 : vector<8x1xf32> to vector<8x8xf32>
    %220 = arith.mulf %215, %219 : vector<8x8xf32>
    %221 = arith.truncf %220 : vector<8x8xf32> to vector<8x8xbf16>
    %cst_84 = arith.constant dense<0.000000e+00> : vector<8x16xf32>
    %222 = tpu.matmul %221, %207, %cst_84 {dimension_numbers = #tpu.dot_dimension_numbers<[1], [0], [0], [1], [0, 0, 1, 1], [], []>} : vector<8x8xbf16>, vector<8x16xbf16>, vector<8x16xf32> -> vector<8x16xf32>
    %c0_85 = arith.constant 0 : index
    %c0_86 = arith.constant 0 : index
    %223 = vector.load %arg13[%c0_85, %c0_86] : memref<8x32xf32, #tpu.memory_space<vmem>>, vector<8x16xf32>
    tpu.vector_store %arg13[%c0_85, %c0_86], %222 {strides = array<i32>} : memref<8x32xf32, #tpu.memory_space<vmem>>, vector<8x16xf32>,
    %224 = vector.extract_strided_slice %201 {offsets = [0, 16], sizes = [8, 16], strides = [1, 1]} : vector<8x128xf32> to vector<8x16xf32>
    %225 = arith.truncf %224 : vector<8x16xf32> to vector<8x16xbf16>
    %226 = vector.extract_strided_slice %201 {offsets = [0, 48], sizes = [8, 16], strides = [1, 1]} : vector<8x128xf32> to vector<8x16xf32>
    %227 = arith.truncf %226 : vector<8x16xf32> to vector<8x16xbf16>
    %228 = vector.extract_strided_slice %201 {offsets = [0, 80], sizes = [8, 16], strides = [1, 1]} : vector<8x128xf32> to vector<8x16xf32>
    %229 = arith.truncf %228 : vector<8x16xf32> to vector<8x16xbf16>
    %cst_87 = arith.constant dense<0.000000e+00> : vector<8x8xf32>
    %230 = tpu.matmul %225, %227, %cst_87 {dimension_numbers = #tpu.dot_dimension_numbers<[1], [1], [0], [0], [0, 0, 1, 0], [], []>} : vector<8x16xbf16>, vector<8x16xbf16>, vector<8x8xf32> -> vector<8x8xf32>
    %231 = vector.broadcast %31 : vector<1x8xf32> to vector<8x8xf32>
    %232 = arith.addf %230, %231 : vector<8x8xf32>
    %cst_88 = arith.constant dense<0xFF800000> : vector<8xf32>
    %233 = vector.multi_reduction <maximumf>, %232, %cst_88 [1] : vector<8x8xf32> to vector<8xf32>
    %234 = vector.shape_cast %233 : vector<8xf32> to vector<8x1xf32>
    %235 = vector.broadcast %234 : vector<8x1xf32> to vector<8x8xf32>
    %236 = arith.subf %232, %235 : vector<8x8xf32>
    %237 = math.exp %236 : vector<8x8xf32>
    %cst_89 = arith.constant dense<0.000000e+00> : vector<8xf32>
    %238 = vector.multi_reduction <add>, %237, %cst_89 [1] : vector<8x8xf32> to vector<8xf32>
    %239 = vector.shape_cast %238 : vector<8xf32> to vector<8x1xf32>
    %240 = tpu.reciprocal %239 {approx = true} : vector<8x1xf32> -> vector<8x1xf32>
    %241 = vector.broadcast %240 : vector<8x1xf32> to vector<8x8xf32>
    %242 = arith.mulf %237, %241 : vector<8x8xf32>
    %243 = arith.truncf %242 : vector<8x8xf32> to vector<8x8xbf16>
    %cst_90 = arith.constant dense<0.000000e+00> : vector<8x16xf32>
    %244 = tpu.matmul %243, %229, %cst_90 {dimension_numbers = #tpu.dot_dimension_numbers<[1], [0], [0], [1], [0, 0, 1, 1], [], []>} : vector<8x8xbf16>, vector<8x16xbf16>, vector<8x16xf32> -> vector<8x16xf32>
    %c0_91 = arith.constant 0 : index
    %c16_92 = arith.constant 16 : index
    %245 = vector.load %arg13[%c0_91, %c16_92] : memref<8x32xf32, #tpu.memory_space<vmem>>, vector<8x16xf32>
    tpu.vector_store %arg13[%c0_91, %c16_92], %244 {strides = array<i32>} : memref<8x32xf32, #tpu.memory_space<vmem>>, vector<8x16xf32>,
    %c0_93 = arith.constant 0 : index
    %c0_94 = arith.constant 0 : index
    %246 = vector.load %arg13[%c0_93, %c0_94] : memref<8x32xf32, #tpu.memory_space<vmem>>, vector<8x32xf32>
    %247 = arith.truncf %246 : vector<8x32xf32> to vector<8x32xbf16>
    %c1_95 = arith.constant 1 : index
    %c0_96 = arith.constant 0 : index
    %c0_97 = arith.constant 0 : index
    %248 = vector.load %arg5[%c1_95, %c0_96, %c0_97] : memref<2x32x32xbf16, #tpu.memory_space<vmem>>, vector<1x32x32xbf16>
    %249 = vector.shape_cast %248 : vector<1x32x32xbf16> to vector<32x32xbf16>
    %cst_98 = arith.constant dense<0.000000e+00> : vector<8x32xf32>
    %250 = tpu.matmul %247, %249, %cst_98 {dimension_numbers = #tpu.dot_dimension_numbers<[1], [0], [0], [1], [0, 0, 1, 1], [], []>} : vector<8x32xbf16>, vector<32x32xbf16>, vector<8x32xf32> -> vector<8x32xf32>
    %c14 = arith.constant 14 : index
    %c0_99 = arith.constant 0 : index
    %251 = vector.load %arg11[%c14, %c0_99] : memref<24x128xf32, #tpu.memory_space<vmem>>, vector<1x32xf32>
    %252 = vector.broadcast %251 : vector<1x32xf32> to vector<8x32xf32>
    %253 = arith.addf %250, %252 : vector<8x32xf32>
    %254 = arith.addf %194, %253 : vector<8x32xf32>
    %c15 = arith.constant 15 : index
    %c0_100 = arith.constant 0 : index
    %255 = vector.load %arg11[%c15, %c0_100] : memref<24x128xf32, #tpu.memory_space<vmem>>, vector<1x32xf32>
    %c16_101 = arith.constant 16 : index
    %c0_102 = arith.constant 0 : index
    %256 = vector.load %arg11[%c16_101, %c0_102] : memref<24x128xf32, #tpu.memory_space<vmem>>, vector<1x32xf32>
    %cst_103 = arith.constant dense<0.000000e+00> : vector<8xf32>
    %257 = vector.multi_reduction <add>, %254, %cst_103 [1] : vector<8x32xf32> to vector<8xf32>
    %258 = vector.shape_cast %257 : vector<8xf32> to vector<8x1xf32>
    %cst_104 = arith.constant 3.200000e+01 : f32
    %259 = vector.broadcast %cst_104 : f32 to vector<8x1xf32>
    %260 = arith.divf %258, %259 : vector<8x1xf32>
    %261 = vector.broadcast %260 : vector<8x1xf32> to vector<8x32xf32>
    %262 = arith.subf %254, %261 : vector<8x32xf32>
    %263 = arith.mulf %262, %262 : vector<8x32xf32>
    %cst_105 = arith.constant dense<0.000000e+00> : vector<8xf32>
    %264 = vector.multi_reduction <add>, %263, %cst_105 [1] : vector<8x32xf32> to vector<8xf32>
    %265 = vector.shape_cast %264 : vector<8xf32> to vector<8x1xf32>
    %cst_106 = arith.constant 3.200000e+01 : f32
    %266 = vector.broadcast %cst_106 : f32 to vector<8x1xf32>
    %267 = arith.divf %265, %266 : vector<8x1xf32>
    %268 = vector.broadcast %260 : vector<8x1xf32> to vector<8x32xf32>
    %269 = arith.subf %254, %268 : vector<8x32xf32>
    %cst_107 = arith.constant 9.99999996E-13 : f32
    %270 = vector.broadcast %cst_107 : f32 to vector<8x1xf32>
    %271 = arith.addf %267, %270 : vector<8x1xf32>
    %272 = math.rsqrt %271 : vector<8x1xf32>
    %273 = vector.broadcast %272 : vector<8x1xf32> to vector<8x32xf32>
    %274 = arith.mulf %269, %273 : vector<8x32xf32>
    %275 = vector.broadcast %255 : vector<1x32xf32> to vector<8x32xf32>
    %276 = arith.mulf %274, %275 : vector<8x32xf32>
    %277 = vector.broadcast %256 : vector<1x32xf32> to vector<8x32xf32>
    %278 = arith.addf %276, %277 : vector<8x32xf32>
    %279 = arith.truncf %278 : vector<8x32xf32> to vector<8x32xbf16>
    %c1_108 = arith.constant 1 : index
    %c0_109 = arith.constant 0 : index
    %c0_110 = arith.constant 0 : index
    %280 = vector.load %arg6[%c1_108, %c0_109, %c0_110] : memref<2x32x128xbf16, #tpu.memory_space<vmem>>, vector<1x32x128xbf16>
    %281 = vector.shape_cast %280 : vector<1x32x128xbf16> to vector<32x128xbf16>
    %cst_111 = arith.constant dense<0.000000e+00> : vector<8x128xf32>
    %282 = tpu.matmul %279, %281, %cst_111 {dimension_numbers = #tpu.dot_dimension_numbers<[1], [0], [0], [1], [0, 0, 1, 1], [], []>} : vector<8x32xbf16>, vector<32x128xbf16>, vector<8x128xf32> -> vector<8x128xf32>
    %c17 = arith.constant 17 : index
    %c0_112 = arith.constant 0 : index
    %283 = vector.load %arg11[%c17, %c0_112] : memref<24x128xf32, #tpu.memory_space<vmem>>, vector<1x128xf32>
    %284 = vector.broadcast %283 : vector<1x128xf32> to vector<8x128xf32>
    %285 = arith.addf %282, %284 : vector<8x128xf32>
    %cst_113 = arith.constant 5.000000e-01 : f32
    %286 = vector.broadcast %cst_113 : f32 to vector<8x128xf32>
    %287 = arith.mulf %286, %285 : vector<8x128xf32>
    %cst_114 = arith.constant 0.707106769 : f32
    %288 = vector.broadcast %cst_114 : f32 to vector<8x128xf32>
    %289 = arith.mulf %285, %288 : vector<8x128xf32>
    %290 = math.absf %289 : vector<8x128xf32>
    %cst_115 = arith.constant 0.327591091 : f32
    %291 = vector.broadcast %cst_115 : f32 to vector<8x128xf32>
    %292 = arith.mulf %291, %290 : vector<8x128xf32>
    %cst_116 = arith.constant 1.000000e+00 : f32
    %293 = vector.broadcast %cst_116 : f32 to vector<8x128xf32>
    %294 = arith.addf %293, %292 : vector<8x128xf32>
    %cst_117 = arith.constant 1.000000e+00 : f32
    %295 = vector.broadcast %cst_117 : f32 to vector<8x128xf32>
    %296 = arith.divf %295, %294 : vector<8x128xf32>
    %cst_118 = arith.constant 1.06140542 : f32
    %297 = vector.broadcast %cst_118 : f32 to vector<8x128xf32>
    %298 = arith.mulf %297, %296 : vector<8x128xf32>
    %cst_119 = arith.constant -1.45315206 : f32
    %299 = vector.broadcast %cst_119 : f32 to vector<8x128xf32>
    %300 = arith.addf %298, %299 : vector<8x128xf32>
    %301 = arith.mulf %300, %296 : vector<8x128xf32>
    %cst_120 = arith.constant 1.42141378 : f32
    %302 = vector.broadcast %cst_120 : f32 to vector<8x128xf32>
    %303 = arith.addf %301, %302 : vector<8x128xf32>
    %304 = arith.mulf %303, %296 : vector<8x128xf32>
    %cst_121 = arith.constant -0.284496725 : f32
    %305 = vector.broadcast %cst_121 : f32 to vector<8x128xf32>
    %306 = arith.addf %304, %305 : vector<8x128xf32>
    %307 = arith.mulf %306, %296 : vector<8x128xf32>
    %cst_122 = arith.constant 0.254829586 : f32
    %308 = vector.broadcast %cst_122 : f32 to vector<8x128xf32>
    %309 = arith.addf %307, %308 : vector<8x128xf32>
    %310 = arith.mulf %309, %296 : vector<8x128xf32>
    %cst_123 = arith.constant 0.000000e+00 : f32
    %311 = vector.broadcast %cst_123 : f32 to vector<8x128xf32>
    %312 = arith.subf %311, %290 : vector<8x128xf32>
    %313 = arith.mulf %312, %290 : vector<8x128xf32>
    %314 = math.exp %313 : vector<8x128xf32>
    %315 = arith.mulf %310, %314 : vector<8x128xf32>
    %cst_124 = arith.constant 1.000000e+00 : f32
    %316 = vector.broadcast %cst_124 : f32 to vector<8x128xf32>
    %317 = arith.subf %316, %315 : vector<8x128xf32>
    %cst_125 = arith.constant 0.000000e+00 : f32
    %318 = vector.broadcast %cst_125 : f32 to vector<8x128xf32>
    %319 = arith.cmpf olt, %289, %318 : vector<8x128xf32>
    %cst_126 = arith.constant 0.000000e+00 : f32
    %320 = vector.broadcast %cst_126 : f32 to vector<8x128xf32>
    %321 = arith.subf %320, %317 : vector<8x128xf32>
    %322 = arith.select %319, %321, %317 : vector<8x128xi1>, vector<8x128xf32>
    %cst_127 = arith.constant 1.000000e+00 : f32
    %323 = vector.broadcast %cst_127 : f32 to vector<8x128xf32>
    %324 = arith.addf %323, %322 : vector<8x128xf32>
    %325 = arith.mulf %287, %324 : vector<8x128xf32>
    %326 = arith.truncf %325 : vector<8x128xf32> to vector<8x128xbf16>
    %c1_128 = arith.constant 1 : index
    %c0_129 = arith.constant 0 : index
    %c0_130 = arith.constant 0 : index
    %327 = vector.load %arg7[%c1_128, %c0_129, %c0_130] : memref<2x128x32xbf16, #tpu.memory_space<vmem>>, vector<1x128x32xbf16>
    %328 = vector.shape_cast %327 : vector<1x128x32xbf16> to vector<128x32xbf16>
    %cst_131 = arith.constant dense<0.000000e+00> : vector<8x32xf32>
    %329 = tpu.matmul %326, %328, %cst_131 {dimension_numbers = #tpu.dot_dimension_numbers<[1], [0], [0], [1], [0, 0, 1, 1], [], []>} : vector<8x128xbf16>, vector<128x32xbf16>, vector<8x32xf32> -> vector<8x32xf32>
    %c18 = arith.constant 18 : index
    %c0_132 = arith.constant 0 : index
    %330 = vector.load %arg11[%c18, %c0_132] : memref<24x128xf32, #tpu.memory_space<vmem>>, vector<1x32xf32>
    %331 = vector.broadcast %330 : vector<1x32xf32> to vector<8x32xf32>
    %332 = arith.addf %329, %331 : vector<8x32xf32>
    %333 = arith.addf %278, %332 : vector<8x32xf32>
    %c19 = arith.constant 19 : index
    %c0_133 = arith.constant 0 : index
    %334 = vector.load %arg11[%c19, %c0_133] : memref<24x128xf32, #tpu.memory_space<vmem>>, vector<1x32xf32>
    %c20 = arith.constant 20 : index
    %c0_134 = arith.constant 0 : index
    %335 = vector.load %arg11[%c20, %c0_134] : memref<24x128xf32, #tpu.memory_space<vmem>>, vector<1x32xf32>
    %cst_135 = arith.constant dense<0.000000e+00> : vector<8xf32>
    %336 = vector.multi_reduction <add>, %333, %cst_135 [1] : vector<8x32xf32> to vector<8xf32>
    %337 = vector.shape_cast %336 : vector<8xf32> to vector<8x1xf32>
    %cst_136 = arith.constant 3.200000e+01 : f32
    %338 = vector.broadcast %cst_136 : f32 to vector<8x1xf32>
    %339 = arith.divf %337, %338 : vector<8x1xf32>
    %340 = vector.broadcast %339 : vector<8x1xf32> to vector<8x32xf32>
    %341 = arith.subf %333, %340 : vector<8x32xf32>
    %342 = arith.mulf %341, %341 : vector<8x32xf32>
    %cst_137 = arith.constant dense<0.000000e+00> : vector<8xf32>
    %343 = vector.multi_reduction <add>, %342, %cst_137 [1] : vector<8x32xf32> to vector<8xf32>
    %344 = vector.shape_cast %343 : vector<8xf32> to vector<8x1xf32>
    %cst_138 = arith.constant 3.200000e+01 : f32
    %345 = vector.broadcast %cst_138 : f32 to vector<8x1xf32>
    %346 = arith.divf %344, %345 : vector<8x1xf32>
    %347 = vector.broadcast %339 : vector<8x1xf32> to vector<8x32xf32>
    %348 = arith.subf %333, %347 : vector<8x32xf32>
    %cst_139 = arith.constant 9.99999996E-13 : f32
    %349 = vector.broadcast %cst_139 : f32 to vector<8x1xf32>
    %350 = arith.addf %346, %349 : vector<8x1xf32>
    %351 = math.rsqrt %350 : vector<8x1xf32>
    %352 = vector.broadcast %351 : vector<8x1xf32> to vector<8x32xf32>
    %353 = arith.mulf %348, %352 : vector<8x32xf32>
    %354 = vector.broadcast %334 : vector<1x32xf32> to vector<8x32xf32>
    %355 = arith.mulf %353, %354 : vector<8x32xf32>
    %356 = vector.broadcast %335 : vector<1x32xf32> to vector<8x32xf32>
    %357 = arith.addf %355, %356 : vector<8x32xf32>
    %358 = vector.extract_strided_slice %357 {offsets = [0, 0], sizes = [1, 32], strides = [1, 1]} : vector<8x32xf32> to vector<1x32xf32>
    %359 = arith.truncf %358 : vector<1x32xf32> to vector<1x32xbf16>
    %c0_140 = arith.constant 0 : index
    %c0_141 = arith.constant 0 : index
    %360 = vector.load %arg8[%c0_140, %c0_141] : memref<32x32xbf16, #tpu.memory_space<vmem>>, vector<32x32xbf16>
    %cst_142 = arith.constant dense<0.000000e+00> : vector<1x32xf32>
    %361 = tpu.matmul %359, %360, %cst_142 {dimension_numbers = #tpu.dot_dimension_numbers<[1], [0], [0], [1], [0, 0, 1, 1], [], []>} : vector<1x32xbf16>, vector<32x32xbf16>, vector<1x32xf32> -> vector<1x32xf32>
    %c2 = arith.constant 2 : index
    %c0_143 = arith.constant 0 : index
    %362 = vector.load %arg11[%c2, %c0_143] : memref<24x128xf32, #tpu.memory_space<vmem>>, vector<1x32xf32>
    %363 = arith.addf %361, %362 : vector<1x32xf32>
    %364 = math.tanh %363 : vector<1x32xf32>
    %365 = arith.truncf %364 : vector<1x32xf32> to vector<1x32xbf16>
    %c0_144 = arith.constant 0 : index
    %c0_145 = arith.constant 0 : index
    %366 = vector.load %arg9[%c0_144, %c0_145] : memref<32x32xbf16, #tpu.memory_space<vmem>>, vector<32x32xbf16>
    %cst_146 = arith.constant dense<0.000000e+00> : vector<1x32xf32>
    %367 = tpu.matmul %365, %366, %cst_146 {dimension_numbers = #tpu.dot_dimension_numbers<[1], [0], [0], [1], [0, 0, 1, 1], [], []>} : vector<1x32xbf16>, vector<32x32xbf16>, vector<1x32xf32> -> vector<1x32xf32>
    %c3 = arith.constant 3 : index
    %c0_147 = arith.constant 0 : index
    %368 = vector.load %arg11[%c3, %c0_147] : memref<24x128xf32, #tpu.memory_space<vmem>>, vector<1x32xf32>
    %369 = arith.addf %367, %368 : vector<1x32xf32>
    %cst_148 = arith.constant 0.000000e+00 : f32
    %370 = vector.broadcast %cst_148 : f32 to vector<1x32xf32>
    %371 = arith.maximumf %369, %370 : vector<1x32xf32>
    %372 = arith.truncf %371 : vector<1x32xf32> to vector<1x32xbf16>
    %c0_149 = arith.constant 0 : index
    %c0_150 = arith.constant 0 : index
    %373 = vector.load %arg10[%c0_149, %c0_150] : memref<32x128xbf16, #tpu.memory_space<vmem>>, vector<32x128xbf16>
    %cst_151 = arith.constant dense<0.000000e+00> : vector<1x128xf32>
    %374 = tpu.matmul %372, %373, %cst_151 {dimension_numbers = #tpu.dot_dimension_numbers<[1], [0], [0], [1], [0, 0, 1, 1], [], []>} : vector<1x32xbf16>, vector<32x128xbf16>, vector<1x128xf32> -> vector<1x128xf32>
    %c4 = arith.constant 4 : index
    %c0_152 = arith.constant 0 : index
    %375 = vector.load %arg11[%c4, %c0_152] : memref<24x128xf32, #tpu.memory_space<vmem>>, vector<1x128xf32>
    %376 = arith.addf %374, %375 : vector<1x128xf32>
    %c0_153 = arith.constant 0 : index
    %c0_154 = arith.constant 0 : index
    %c0_155 = arith.constant 0 : index
    %377 = vector.load %arg12[%c0_153, %c0_154, %c0_155] : memref<1x1x128xf32, #tpu.memory_space<vmem>>, vector<1x1x128xf32>
    %378 = vector.shape_cast %377 : vector<1x1x128xf32> to vector<1x128xf32>
    %379 = vector.shape_cast %376 : vector<1x128xf32> to vector<1x1x128xf32>
    tpu.vector_store %arg12[%c0_153, %c0_154, %c0_155], %379 {strides = array<i32>} : memref<1x1x128xf32, #tpu.memory_space<vmem>>, vector<1x1x128xf32>,
    return
  }
  func.func @transform_0(%arg0: i32) -> (i32, i32, i32) {
    %c0_i32 = arith.constant 0 : i32
    %c0_i32_0 = arith.constant 0 : i32
    %c0_i32_1 = arith.constant 0 : i32
    return %arg0, %c0_i32, %c0_i32_0 : i32, i32, i32
  }
  func.func @transform_1(%arg0: i32) -> (i32, i32, i32) {
    %c0_i32 = arith.constant 0 : i32
    %c0_i32_0 = arith.constant 0 : i32
    %c0_i32_1 = arith.constant 0 : i32
    return %arg0, %c0_i32, %c0_i32_0 : i32, i32, i32
  }
  func.func @transform_2(%arg0: i32) -> (i32, i32, i32) {
    %c0_i32 = arith.constant 0 : i32
    %c0_i32_0 = arith.constant 0 : i32
    %c0_i32_1 = arith.constant 0 : i32
    return %arg0, %c0_i32, %c0_i32_0 : i32, i32, i32
  }
  func.func @transform_3(%arg0: i32) -> (i32, i32, i32) {
    %c0_i32 = arith.constant 0 : i32
    %c0_i32_0 = arith.constant 0 : i32
    %c0_i32_1 = arith.constant 0 : i32
    %c0_i32_2 = arith.constant 0 : i32
    return %c0_i32, %c0_i32_0, %c0_i32_1 : i32, i32, i32
  }
  func.func @transform_4(%arg0: i32) -> (i32, i32, i32) {
    %c0_i32 = arith.constant 0 : i32
    %c0_i32_0 = arith.constant 0 : i32
    %c0_i32_1 = arith.constant 0 : i32
    %c0_i32_2 = arith.constant 0 : i32
    return %c0_i32, %c0_i32_0, %c0_i32_1 : i32, i32, i32
  }
  func.func @transform_5(%arg0: i32) -> (i32, i32, i32) {
    %c0_i32 = arith.constant 0 : i32
    %c0_i32_0 = arith.constant 0 : i32
    %c0_i32_1 = arith.constant 0 : i32
    %c0_i32_2 = arith.constant 0 : i32
    return %c0_i32, %c0_i32_0, %c0_i32_1 : i32, i32, i32
  }
  func.func @transform_6(%arg0: i32) -> (i32, i32, i32) {
    %c0_i32 = arith.constant 0 : i32
    %c0_i32_0 = arith.constant 0 : i32
    %c0_i32_1 = arith.constant 0 : i32
    %c0_i32_2 = arith.constant 0 : i32
    return %c0_i32, %c0_i32_0, %c0_i32_1 : i32, i32, i32
  }
  func.func @transform_7(%arg0: i32) -> (i32, i32) {
    %c0_i32 = arith.constant 0 : i32
    %c0_i32_0 = arith.constant 0 : i32
    %c0_i32_1 = arith.constant 0 : i32
    return %c0_i32, %c0_i32_0 : i32, i32
  }
  func.func @transform_8(%arg0: i32) -> (i32, i32) {
    %c0_i32 = arith.constant 0 : i32
    %c0_i32_0 = arith.constant 0 : i32
    %c0_i32_1 = arith.constant 0 : i32
    return %c0_i32, %c0_i32_0 : i32, i32
  }
  func.func @transform_9(%arg0: i32) -> (i32, i32) {
    %c0_i32 = arith.constant 0 : i32
    %c0_i32_0 = arith.constant 0 : i32
    %c0_i32_1 = arith.constant 0 : i32
    return %c0_i32, %c0_i32_0 : i32, i32
  }
  func.func @transform_10(%arg0: i32) -> (i32, i32) {
    %c0_i32 = arith.constant 0 : i32
    %c0_i32_0 = arith.constant 0 : i32
    %c0_i32_1 = arith.constant 0 : i32
    return %c0_i32, %c0_i32_0 : i32, i32
  }
  func.func @transform_11(%arg0: i32) -> (i32, i32, i32) {
    %c0_i32 = arith.constant 0 : i32
    %c0_i32_0 = arith.constant 0 : i32
    %c0_i32_1 = arith.constant 0 : i32
    return %arg0, %c0_i32, %c0_i32_0 : i32, i32, i32
  }
}

</mosaic_0001>

<llo_original>
// kernel: clf_model_forward.1
$region0: #{clf_model_forward.1}
  #allocation0 [shape = 'u32[]', space=smem, size = 0x4, offset = 0x4, fixed_abs, tag = 'smem constant byte address 0x4 - core index']
  #allocation1 [shape = 'u32[144,128]{1,0:T(1,128)}', space=vmem, size = 0x12000, scoped, tag = 'internal scratch']
  #allocation2 [shape = 'f32[8,32]{1,0:T(8,128)}', space=vmem, size = 0x1000, scoped, tag = 'scratch operand']
  %s0 = inlined_call_operand.vmem [shape: f32[2,8,32], index: 0, kind: input, shape index: {}]
  %s1 = inlined_call_operand.vmem [shape: f32[2,1,8], index: 1, kind: input, shape index: {}]
  %s2 = inlined_call_operand.vmem [shape: f32[2,8,1], index: 2, kind: input, shape index: {}]
  %s3 = inlined_call_operand.vmem [shape: bf16[2,32,128], index: 3, kind: input, shape index: {}]
  %s4 = inlined_call_operand.vmem [shape: bf16[2,32,32], index: 4, kind: input, shape index: {}]
  %s5 = inlined_call_operand.vmem [shape: bf16[2,32,128], index: 5, kind: input, shape index: {}]
  %s6 = inlined_call_operand.vmem [shape: bf16[2,128,32], index: 6, kind: input, shape index: {}]
  %s7 = inlined_call_operand.vmem [shape: bf16[32,32], index: 7, kind: input, shape index: {}]
  %s8 = inlined_call_operand.vmem [shape: bf16[32,32], index: 8, kind: input, shape index: {}]
  %s9 = inlined_call_operand.vmem [shape: bf16[32,128], index: 9, kind: input, shape index: {}]
  %s10 = inlined_call_operand.vmem [shape: f32[24,128], index: 10, kind: input, shape index: {}]
  %s11 = inlined_call_operand.hbm [shape: f32[2,1,128], index: 11, kind: output, shape index: {}]
  %s12 = sld [smem:[#allocation0]]
  $region77: #{clf_model_forward.1} parent=0
    _
  %s14 = ssub.s32 1, %s12
  %s15 = scalar_select 0, %s14, %s12
  $region1: #{clf_model_forward.1} parent=0
    #allocation3 [shape = 'u8[1024]{0}', space=vmem, size = 0x400, scoped, tag = 'output window, operand 0']
    #allocation4 [shape = 's32[2]{0}', space=sflag, size = 0x8, scoped, tag = 'scoped memory for clf_model_forward.1']
    %16 = vsyncpa [#allocation4], 0
    %s17 = scalar_lea.sflag [#allocation4], 1
    %18 = vsyncpa %s17, 0
    loop: start=0, step=1, limit=4
    $region2: #{clf_model_forward.1} parent=1 // loop_pre_header
      _
    $region3: #{clf_model_forward.1} parent=1 // loop_header
      %s20 = sphi 0, %s24
      %p21 = scmp.ge.s32.totalorder %s20, 4
      %s30 = sphi 0, %s32
      %s33 = sphi 0, %s30
      %s34 = sphi 0, %s33
      %s50 = sphi 0, %s34
      %s56 = sphi 0, %s58
      %s59 = sphi 0, %s56
      %s60 = sphi 0, %s59
      %s76 = sphi 0, %s60
      %s82 = sphi 0, %s84
      %s85 = sphi 0, %s82
      %s86 = sphi 0, %s85
      %s102 = sphi 0, %s86
      %s106 = sphi 0, %s106
      %s108 = sphi 0, %s106
      %s109 = sphi 0, %s108
      %s123 = sphi 0, %s109
      %s127 = sphi 0, %s127
      %s129 = sphi 0, %s127
      %s130 = sphi 0, %s129
      %s144 = sphi 0, %s130
      %s148 = sphi 0, %s148
      %s150 = sphi 0, %s148
      %s151 = sphi 0, %s150
      %s165 = sphi 0, %s151
      %s169 = sphi 0, %s169
      %s171 = sphi 0, %s169
      %s172 = sphi 0, %s171
      %s186 = sphi 0, %s172
      %s190 = sphi 0, %s190
      %s192 = sphi 0, %s190
      %s193 = sphi 0, %s192
      %s207 = sphi 0, %s193
      %s211 = sphi 0, %s211
      %s213 = sphi 0, %s211
      %s214 = sphi 0, %s213
      %s228 = sphi 0, %s214
      %s232 = sphi 0, %s232
      %s234 = sphi 0, %s232
      %s235 = sphi 0, %s234
      %s249 = sphi 0, %s235
      %s253 = sphi 0, %s253
      %s255 = sphi 0, %s253
      %s256 = sphi 0, %s255
      %s270 = sphi 0, %s256
      %s276 = sphi 0, %s278
      %s279 = sphi 0, %s276
      %s280 = sphi 0, %s279
      %s296 = sphi 0, %s280
    $region4: #{clf_model_forward.1} parent=1 // loop_header_branch
      %23 = sbr.rel (%p21) target = $region8
    $region5: #{clf_model_forward.1} parent=1 // loop_body
      %s25 = ssub.s32 %s20, 1
      %s26 = ssub.s32 %s20, 2
      %s27 = sadd.s32 %s20, 1
      %s28 = ssub.s32 %s20, %s27
      %p29 = scmp.eq.s32.totalorder %s28, 0
      %s31 = sadd.s32 %s30, 1
      %s32 = scalar_select %p29, %s30, %s31
      %p35 = pneg %p29
      %p36 = scmp.eq.s32.totalorder %s20, 1
      %p37 = por %p35, %p36
      %p38 = scmp.ne.s32.totalorder %s30, %s33
      %p39 = scmp.eq.s32.totalorder %s20, 0
      %p40 = por %p38, %p39
      %p41 = scmp.ne.s32.totalorder %s30, %s33
      %p42 = scmp.eq.s32.totalorder %s25, 1
      %p43 = por %p41, %p42
      %p44 = scmp.ne.s32.totalorder %s33, %s34
      %p45 = scmp.eq.s32.totalorder %s25, 0
      %p46 = por %p44, %p45
      %p47 = scmp.ne.s32.totalorder %s33, %s34
      %p48 = scmp.eq.s32.totalorder %s26, 1
      %p49 = por %p47, %p48
      %p51 = scmp.ne.s32.totalorder %s34, %s50
      %p52 = scmp.eq.s32.totalorder %s26, 0
      %p53 = por %p51, %p52
      %s54 = ssub.s32 %s20, %s27
      %p55 = scmp.eq.s32.totalorder %s54, 0
      %s57 = sadd.s32 %s56, 1
      %s58 = scalar_select %p55, %s56, %s57
      %p61 = pneg %p55
      %p62 = scmp.eq.s32.totalorder %s20, 1
      %p63 = por %p61, %p62
      %p64 = scmp.ne.s32.totalorder %s56, %s59
      %p65 = scmp.eq.s32.totalorder %s20, 0
      %p66 = por %p64, %p65
      %p67 = scmp.ne.s32.totalorder %s56, %s59
      %p68 = scmp.eq.s32.totalorder %s25, 1
      %p69 = por %p67, %p68
      %p70 = scmp.ne.s32.totalorder %s59, %s60
      %p71 = scmp.eq.s32.totalorder %s25, 0
      %p72 = por %p70, %p71
      %p73 = scmp.ne.s32.totalorder %s59, %s60
      %p74 = scmp.eq.s32.totalorder %s26, 1
      %p75 = por %p73, %p74
      %p77 = scmp.ne.s32.totalorder %s60, %s76
      %p78 = scmp.eq.s32.totalorder %s26, 0
      %p79 = por %p77, %p78
      %s80 = ssub.s32 %s20, %s27
      %p81 = scmp.eq.s32.totalorder %s80, 0
      %s83 = sadd.s32 %s82, 1
      %s84 = scalar_select %p81, %s82, %s83
      %p87 = pneg %p81
      %p88 = scmp.eq.s32.totalorder %s20, 1
      %p89 = por %p87, %p88
      %p90 = scmp.ne.s32.totalorder %s82, %s85
      %p91 = scmp.eq.s32.totalorder %s20, 0
      %p92 = por %p90, %p91
      %p93 = scmp.ne.s32.totalorder %s82, %s85
      %p94 = scmp.eq.s32.totalorder %s25, 1
      %p95 = por %p93, %p94
      %p96 = scmp.ne.s32.totalorder %s85, %s86
      %p97 = scmp.eq.s32.totalorder %s25, 0
      %p98 = por %p96, %p97
      %p99 = scmp.ne.s32.totalorder %s85, %s86
      %p100 = scmp.eq.s32.totalorder %s26, 1
      %p101 = por %p99, %p100
      %p103 = scmp.ne.s32.totalorder %s86, %s102
      %p104 = scmp.eq.s32.totalorder %s26, 0
      %p105 = por %p103, %p104
      %s107 = sadd.s32 %s106, 1
      %p110 = scmp.eq.s32.totalorder %s20, 1
      %p111 = scmp.ne.s32.totalorder %s106, %s108
      %p112 = scmp.eq.s32.totalorder %s20, 0
      %p113 = por %p111, %p112
      %p114 = scmp.ne.s32.totalorder %s106, %s108
      %p115 = scmp.eq.s32.totalorder %s25, 1
      %p116 = por %p114, %p115
      %p117 = scmp.ne.s32.totalorder %s108, %s109
      %p118 = scmp.eq.s32.totalorder %s25, 0
      %p119 = por %p117, %p118
      %p120 = scmp.ne.s32.totalorder %s108, %s109
      %p121 = scmp.eq.s32.totalorder %s26, 1
      %p122 = por %p120, %p121
      %p124 = scmp.ne.s32.totalorder %s109, %s123
      %p125 = scmp.eq.s32.totalorder %s26, 0
      %p126 = por %p124, %p125
      %s128 = sadd.s32 %s127, 1
      %p131 = scmp.eq.s32.totalorder %s20, 1
      %p132 = scmp.ne.s32.totalorder %s127, %s129
      %p133 = scmp.eq.s32.totalorder %s20, 0
      %p134 = por %p132, %p133
      %p135 = scmp.ne.s32.totalorder %s127, %s129
      %p136 = scmp.eq.s32.totalorder %s25, 1
      %p137 = por %p135, %p136
      %p138 = scmp.ne.s32.totalorder %s129, %s130
      %p139 = scmp.eq.s32.totalorder %s25, 0
      %p140 = por %p138, %p139
      %p141 = scmp.ne.s32.totalorder %s129, %s130
      %p142 = scmp.eq.s32.totalorder %s26, 1
      %p143 = por %p141, %p142
      %p145 = scmp.ne.s32.totalorder %s130, %s144
      %p146 = scmp.eq.s32.totalorder %s26, 0
      %p147 = por %p145, %p146
      %s149 = sadd.s32 %s148, 1
      %p152 = scmp.eq.s32.totalorder %s20, 1
      %p153 = scmp.ne.s32.totalorder %s148, %s150
      %p154 = scmp.eq.s32.totalorder %s20, 0
      %p155 = por %p153, %p154
      %p156 = scmp.ne.s32.totalorder %s148, %s150
      %p157 = scmp.eq.s32.totalorder %s25, 1
      %p158 = por %p156, %p157
      %p159 = scmp.ne.s32.totalorder %s150, %s151
      %p160 = scmp.eq.s32.totalorder %s25, 0
      %p161 = por %p159, %p160
      %p162 = scmp.ne.s32.totalorder %s150, %s151
      %p163 = scmp.eq.s32.totalorder %s26, 1
      %p164 = por %p162, %p163
      %p166 = scmp.ne.s32.totalorder %s151, %s165
      %p167 = scmp.eq.s32.totalorder %s26, 0
      %p168 = por %p166, %p167
      %s170 = sadd.s32 %s169, 1
      %p173 = scmp.eq.s32.totalorder %s20, 1
      %p174 = scmp.ne.s32.totalorder %s169, %s171
      %p175 = scmp.eq.s32.totalorder %s20, 0
      %p176 = por %p174, %p175
      %p177 = scmp.ne.s32.totalorder %s169, %s171
      %p178 = scmp.eq.s32.totalorder %s25, 1
      %p179 = por %p177, %p178
      %p180 = scmp.ne.s32.totalorder %s171, %s172
      %p181 = scmp.eq.s32.totalorder %s25, 0
      %p182 = por %p180, %p181
      %p183 = scmp.ne.s32.totalorder %s171, %s172
      %p184 = scmp.eq.s32.totalorder %s26, 1
      %p185 = por %p183, %p184
      %p187 = scmp.ne.s32.totalorder %s172, %s186
      %p188 = scmp.eq.s32.totalorder %s26, 0
      %p189 = por %p187, %p188
      %s191 = sadd.s32 %s190, 1
      %p194 = scmp.eq.s32.totalorder %s20, 1
      %p195 = scmp.ne.s32.totalorder %s190, %s192
      %p196 = scmp.eq.s32.totalorder %s20, 0
      %p197 = por %p195, %p196
      %p198 = scmp.ne.s32.totalorder %s190, %s192
      %p199 = scmp.eq.s32.totalorder %s25, 1
      %p200 = por %p198, %p199
      %p201 = scmp.ne.s32.totalorder %s192, %s193
      %p202 = scmp.eq.s32.totalorder %s25, 0
      %p203 = por %p201, %p202
      %p204 = scmp.ne.s32.totalorder %s192, %s193
      %p205 = scmp.eq.s32.totalorder %s26, 1
      %p206 = por %p204, %p205
      %p208 = scmp.ne.s32.totalorder %s193, %s207
      %p209 = scmp.eq.s32.totalorder %s26, 0
      %p210 = por %p208, %p209
      %s212 = sadd.s32 %s211, 1
      %p215 = scmp.eq.s32.totalorder %s20, 1
      %p216 = scmp.ne.s32.totalorder %s211, %s213
      %p217 = scmp.eq.s32.totalorder %s20, 0
      %p218 = por %p216, %p217
      %p219 = scmp.ne.s32.totalorder %s211, %s213
      %p220 = scmp.eq.s32.totalorder %s25, 1
      %p221 = por %p219, %p220
      %p222 = scmp.ne.s32.totalorder %s213, %s214
      %p223 = scmp.eq.s32.totalorder %s25, 0
      %p224 = por %p222, %p223
      %p225 = scmp.ne.s32.totalorder %s213, %s214
      %p226 = scmp.eq.s32.totalorder %s26, 1
      %p227 = por %p225, %p226
      %p229 = scmp.ne.s32.totalorder %s214, %s228
      %p230 = scmp.eq.s32.totalorder %s26, 0
      %p231 = por %p229, %p230
      %s233 = sadd.s32 %s232, 1
      %p236 = scmp.eq.s32.totalorder %s20, 1
      %p237 = scmp.ne.s32.totalorder %s232, %s234
      %p238 = scmp.eq.s32.totalorder %s20, 0
      %p239 = por %p237, %p238
      %p240 = scmp.ne.s32.totalorder %s232, %s234
      %p241 = scmp.eq.s32.totalorder %s25, 1
      %p242 = por %p240, %p241
      %p243 = scmp.ne.s32.totalorder %s234, %s235
      %p244 = scmp.eq.s32.totalorder %s25, 0
      %p245 = por %p243, %p244
      %p246 = scmp.ne.s32.totalorder %s234, %s235
      %p247 = scmp.eq.s32.totalorder %s26, 1
      %p248 = por %p246, %p247
      %p250 = scmp.ne.s32.totalorder %s235, %s249
      %p251 = scmp.eq.s32.totalorder %s26, 0
      %p252 = por %p250, %p251
      %s254 = sadd.s32 %s253, 1
      %p257 = scmp.eq.s32.totalorder %s20, 1
      %p258 = scmp.ne.s32.totalorder %s253, %s255
      %p259 = scmp.eq.s32.totalorder %s20, 0
      %p260 = por %p258, %p259
      %p261 = scmp.ne.s32.totalorder %s253, %s255
      %p262 = scmp.eq.s32.totalorder %s25, 1
      %p263 = por %p261, %p262
      %p264 = scmp.ne.s32.totalorder %s255, %s256
      %p265 = scmp.eq.s32.totalorder %s25, 0
      %p266 = por %p264, %p265
      %p267 = scmp.ne.s32.totalorder %s255, %s256
      %p268 = scmp.eq.s32.totalorder %s26, 1
      %p269 = por %p267, %p268
      %p271 = scmp.ne.s32.totalorder %s256, %s270
      %p272 = scmp.eq.s32.totalorder %s26, 0
      %p273 = por %p271, %p272
      %s274 = ssub.s32 %s20, %s27
      %p275 = scmp.eq.s32.totalorder %s274, 0
      %s277 = sadd.s32 %s276, 1
      %s278 = scalar_select %p275, %s276, %s277
      %p281 = pneg %p275
      %p282 = scmp.eq.s32.totalorder %s20, 1
      %p283 = por %p281, %p282
      %p284 = scmp.ne.s32.totalorder %s276, %s279
      %p285 = scmp.eq.s32.totalorder %s20, 0
      %p286 = por %p284, %p285
      %p287 = scmp.ne.s32.totalorder %s276, %s279
      %p288 = scmp.eq.s32.totalorder %s25, 1
      %p289 = por %p287, %p288
      %p290 = scmp.ne.s32.totalorder %s279, %s280
      %p291 = scmp.eq.s32.totalorder %s25, 0
      %p292 = por %p290, %p291
      %p293 = scmp.ne.s32.totalorder %s279, %s280
      %p294 = scmp.eq.s32.totalorder %s26, 1
      %p295 = por %p293, %p294
      %p297 = scmp.ne.s32.totalorder %s280, %s296
      %p298 = scmp.eq.s32.totalorder %s26, 0
      %p299 = por %p297, %p298
      %p300 = scmp.le.s32.totalorder 1, %s20
      %p301 = scmp.lt.s32.totalorder %s20, 3
      %p302 = pnand %p300, %p301
      %p303 = pneg %p302
      // Predicated region
      $region9: #{clf_model_forward.1} parent=5 // pred_check
        _
      $region10: #{clf_model_forward.1} parent=5 // pred_check_branch
        %305 = sbr.rel (%p302) target = $region12
      $region11: #{clf_model_forward.1} parent=5 // pred_region
        %s306 = ssub.s32 %s20, 1
        // Predicated region
        $region13: #{clf_model_forward.1} parent=11 // pred_check
          %p307 = pneg %p119
        $region14: #{clf_model_forward.1} parent=11 // pred_check_branch
          %309 = sbr.rel (%p307) target = $region16
        $region15: #{clf_model_forward.1} parent=11 // pred_region
          _
        $region16: #{clf_model_forward.1} parent=11 // pred_fallthru
          _
        // Predicated region
        $region17: #{clf_model_forward.1} parent=11 // pred_check
          %p310 = pneg %p140
        $region18: #{clf_model_forward.1} parent=11 // pred_check_branch
          %312 = sbr.rel (%p310) target = $region20
        $region19: #{clf_model_forward.1} parent=11 // pred_region
          _
        $region20: #{clf_model_forward.1} parent=11 // pred_fallthru
          _
        // Predicated region
        $region21: #{clf_model_forward.1} parent=11 // pred_check
          %p313 = pneg %p161
        $region22: #{clf_model_forward.1} parent=11 // pred_check_branch
          %315 = sbr.rel (%p313) target = $region24
        $region23: #{clf_model_forward.1} parent=11 // pred_region
          _
        $region24: #{clf_model_forward.1} parent=11 // pred_fallthru
          _
        // Predicated region
        $region25: #{clf_model_forward.1} parent=11 // pred_check
          %p316 = pneg %p182
        $region26: #{clf_model_forward.1} parent=11 // pred_check_branch
          %318 = sbr.rel (%p316) target = $region28
        $region27: #{clf_model_forward.1} parent=11 // pred_region
          _
        $region28: #{clf_model_forward.1} parent=11 // pred_fallthru
          _
        // Predicated region
        $region29: #{clf_model_forward.1} parent=11 // pred_check
          %p319 = pneg %p203
        $region30: #{clf_model_forward.1} parent=11 // pred_check_branch
          %321 = sbr.rel (%p319) target = $region32
        $region31: #{clf_model_forward.1} parent=11 // pred_region
          _
        $region32: #{clf_model_forward.1} parent=11 // pred_fallthru
          _
        // Predicated region
        $region33: #{clf_model_forward.1} parent=11 // pred_check
          %p322 = pneg %p224
        $region34: #{clf_model_forward.1} parent=11 // pred_check_branch
          %324 = sbr.rel (%p322) target = $region36
        $region35: #{clf_model_forward.1} parent=11 // pred_region
          _
        $region36: #{clf_model_forward.1} parent=11 // pred_fallthru
          _
        // Predicated region
        $region37: #{clf_model_forward.1} parent=11 // pred_check
          %p325 = pneg %p245
        $region38: #{clf_model_forward.1} parent=11 // pred_check_branch
          %327 = sbr.rel (%p325) target = $region40
        $region39: #{clf_model_forward.1} parent=11 // pred_region
          _
        $region40: #{clf_model_forward.1} parent=11 // pred_fallthru
          _
        // Predicated region
        $region41: #{clf_model_forward.1} parent=11 // pred_check
          %p328 = pneg %p266
        $region42: #{clf_model_forward.1} parent=11 // pred_check_branch
          %330 = sbr.rel (%p328) target = $region44
        $region43: #{clf_model_forward.1} parent=11 // pred_region
          _
        $region44: #{clf_model_forward.1} parent=11 // pred_fallthru
          _
      $region12: #{clf_model_forward.1} parent=5 // pred_fallthru
        _
      %p331 = scmp.lt.s32.totalorder %s20, 2
      // Predicated region
      $region45: #{clf_model_forward.1} parent=5 // pred_check
        %p332 = pneg %p331
      $region46: #{clf_model_forward.1} parent=5 // pred_check_branch
        %334 = sbr.rel (%p332) target = $region48
      $region47: #{clf_model_forward.1} parent=5 // pred_region
        // Predicated region
        $region49: #{clf_model_forward.1} parent=47 // pred_check
          %p335 = pneg %p40
        $region50: #{clf_model_forward.1} parent=47 // pred_check_branch
          %337 = sbr.rel (%p335) target = $region52
        $region51: #{clf_model_forward.1} parent=47 // pred_region
          %p338 = scmp.lt.s32.totalorder %s20, 1
          %s339 = scalar_select %p338, %s20, 1
          %s340 = smul.addr %s339, 8
          %s341 = scalar_lea.vmem %s0, %s340
        $region52: #{clf_model_forward.1} parent=47 // pred_fallthru
          _
        // Predicated region
        $region53: #{clf_model_forward.1} parent=47 // pred_check
          %p342 = pneg %p66
        $region54: #{clf_model_forward.1} parent=47 // pred_check_branch
          %344 = sbr.rel (%p342) target = $region56
        $region55: #{clf_model_forward.1} parent=47 // pred_region
          %p345 = scmp.lt.s32.totalorder %s20, 1
          %s346 = scalar_select %p345, %s20, 1
          %s347 = scalar_lea.vmem %s1, %s346
        $region56: #{clf_model_forward.1} parent=47 // pred_fallthru
          _
        // Predicated region
        $region57: #{clf_model_forward.1} parent=47 // pred_check
          %p348 = pneg %p92
        $region58: #{clf_model_forward.1} parent=47 // pred_check_branch
          %350 = sbr.rel (%p348) target = $region60
        $region59: #{clf_model_forward.1} parent=47 // pred_region
          %p351 = scmp.lt.s32.totalorder %s20, 1
          %s352 = scalar_select %p351, %s20, 1
          %s353 = smul.addr %s352, 8
          %s354 = scalar_lea.vmem %s2, %s353
        $region60: #{clf_model_forward.1} parent=47 // pred_fallthru
          _
      $region48: #{clf_model_forward.1} parent=5 // pred_fallthru
        _
      %p355 = scmp.le.s32.totalorder 1, %s20
      %p356 = scmp.lt.s32.totalorder %s20, 3
      %p357 = pnand %p355, %p356
      %p358 = pneg %p357
      // Predicated region
      $region61: #{clf_model_forward.1} parent=5 // pred_check
        _
      $region62: #{clf_model_forward.1} parent=5 // pred_check_branch
        %360 = sbr.rel (%p357) target = $region64
      $region63: #{clf_model_forward.1} parent=5 // pred_region
        %s361 = ssub.s32 %s20, 1
        %p362 = scmp.lt.s32.totalorder %s25, 1
        %s363 = scalar_select %p362, %s25, 1
        %s364 = smul.addr %s363, 8
        %s365 = scalar_lea.vmem %s0, %s364
        %p366 = pneg %p46
        %p367 = pneg %p43
        %p368 = scmp.lt.s32.totalorder %s25, 1
        %s369 = scalar_select %p368, %s25, 1
        %s370 = scalar_lea.vmem %s1, %s369
        %p371 = pneg %p72
        %p372 = pneg %p69
        %p373 = scmp.lt.s32.totalorder %s25, 1
        %s374 = scalar_select %p373, %s25, 1
        %s375 = smul.addr %s374, 8
        %s376 = scalar_lea.vmem %s2, %s375
        %p377 = pneg %p98
        %p378 = pneg %p95
        %p379 = pneg %p119
        %p380 = pneg %p116
        %p381 = pneg %p140
        %p382 = pneg %p137
        %p383 = pneg %p161
        %p384 = pneg %p158
        %p385 = pneg %p182
        %p386 = pneg %p179
        %p387 = pneg %p203
        %p388 = pneg %p200
        %p389 = pneg %p224
        %p390 = pneg %p221
        %p391 = pneg %p245
        %p392 = pneg %p242
        %p393 = pneg %p266
        %p394 = pneg %p263
        %p395 = pneg %p292
        %p396 = pneg %p289
        %s397 = sand.u32 %s279, 1
        %s398 = scalar_lea.sflag [#allocation4], %s397
        %s399 = sand.u32 %s279, 1
        %s400 = scalar_lea.vmem [#allocation3], %s399
        %p401 = scmp.lt.s32.totalorder %s25, 1
        %s402 = scalar_select %p401, %s25, 1
        %s403 = smul.addr %s402, 8
        %s404 = scalar_lea.vmem %s0, %s403
        %p405 = scmp.lt.s32.totalorder %s25, 1
        %s406 = scalar_select %p405, %s25, 1
        %s407 = scalar_lea.vmem %s1, %s406
        %p408 = scmp.lt.s32.totalorder %s25, 1
        %s409 = scalar_select %p408, %s25, 1
        %s410 = smul.addr %s409, 8
        %s411 = scalar_lea.vmem %s2, %s410
        %v413 = vld [vmem:[%s404] sm:$0xff]
        %v414 = vld [vmem:[%s10] sm:$0x1]
        %v415 = vld [vmem:[%s10 + $0x1] sm:$0x1]
        %vm416 = vcmask 261120
        %v417 = vsel %vm416, %v413, 0.0
        %418 = vadd.xlane.f32.xlu0 %v417
        %v419 = vpop.xlane.xlu0 %418
        %v420 = vrcp.pop 32.0
        %v421 = vmul.f32 %v419, %v420
        %v422 = vsub.f32 %v413, %v421
        %v423 = vmul.f32 %v422, %v422
        %v424 = vsel %vm416, %v423, 0.0
        %425 = vadd.xlane.f32.xlu0 %v424
        %v426 = vpop.xlane.xlu0 %425
        %v427 = vmul.f32 %v426, %v420
        %v428 = vadd.f32 %v427, 1e-12
        %v429 = vrsqrt.pop %v428
        %v430 = vmul.f32 %v422, %v429
        %v431 = vlaneseq
        %v432 = vshrl.u32 %v431, 7
        %v433 = vsub.s32 0, %v432
        %v434 = vrot.slane %v414, %v433
        %v435 = vmul.f32 %v430, %v434
        %v436 = vlaneseq
        %v437 = vshrl.u32 %v436, 7
        %v438 = vsub.s32 0, %v437
        %v439 = vrot.slane %v415, %v438
        %v440 = vadd.f32 %v435, %v439
        %v441 = vld [vmem:[%s407] sm:$0x1]
        %v442 = vsub.f32 1.0, %v441
        %v443 = vmul.f32 %v442, -1e+09
        %v444 = vpack.c.bf16 %v440, %v440
        %v445 = vld [vmem:[%s3] sm:$0xf]
        %v446 = vld [vmem:[%s3 + $0x4] sm:$0xf]
        %v447 = vld [vmem:[%s3 + $0x8] sm:$0xf]
        %v448 = vld [vmem:[%s3 + $0xc] sm:$0xf]
        %v449 = vld [vmem:[%s10 + $0x5] sm:$0x1]
        %v450 = vlaneseq
        %v451 = vshrl.u32 %v450, 7
        %v452 = vsub.s32 0, %v451
        %v453 = vrot.slane %v449, %v452
        %v458 = vunpack.c.l.b16 %v445
        %v459 = vunpack.c.l.b16 %v446
        %v460 = vunpack.c.l.b16 %v447
        %v461 = vunpack.c.l.b16 %v448
        %v462 = vpack.c.b16 %v459, %v458
        %v463 = vpack.c.b16 %v461, %v460
        %v467 = vsel %vm416, %v444, 0
        %469 = vmatprep.subr.bf16.mxu0 0
        %470 = vmatpush1.bf16.msra.mxu0 %v462
        %471 = vmatprep.subr.bf16.mxu0 0
        %472 = vmatpush1.bf16.msra.mxu0 %v463
        %473 = vmatprep.subr.bf16.mxu0 0
        %474 = vmatpush1.bf16.msra.mxu0 0
        %475 = vmatprep.subr.bf16.mxu0 0
        %476 = vmatpush1.bf16.msra.mxu0 0
        %477 = vmatprep.subr.bf16.mxu0 0
        %478 = vmatpush1.bf16.msra.mxu0 0
        %479 = vmatprep.subr.bf16.mxu0 0
        %480 = vmatpush1.bf16.msra.mxu0 0
        %481 = vmatprep.subr.bf16.mxu0 0
        %482 = vmatpush1.bf16.msra.mxu0 0
        %483 = vmatprep.subr.bf16.mxu0 0
        %484 = vmatpush1.bf16.msra.mxu0 0
        %485 = vmatprep.subr.bf16.mxu0 0
        %486 = vmatpush1.bf16.msra.mxu0 0
        %487 = vmatprep.subr.bf16.mxu0 0
        %488 = vmatpush1.bf16.msra.mxu0 0
        %489 = vmatprep.subr.bf16.mxu0 0
        %490 = vmatpush1.bf16.msra.mxu0 0
        %491 = vmatprep.subr.bf16.mxu0 0
        %492 = vmatpush1.bf16.msra.mxu0 0
        %493 = vmatprep.subr.bf16.mxu0 0
        %494 = vmatpush1.bf16.msra.mxu0 0
        %495 = vmatprep.subr.bf16.mxu0 0
        %496 = vmatpush1.bf16.msra.mxu0 0
        %497 = vmatprep.subr.bf16.mxu0 0
        %498 = vmatpush1.bf16.msra.mxu0 0
        %499 = vmatprep.subr.bf16.mxu0 0
        %500 = vmatpush1.bf16.msra.mxu0 0
        %501 = vmatprep.mubr.bf16.mxu0 0
        %502 = vmatmul.mubr.bf16.gmra.mrb[0].mxu0 %v467
        %v503 = vpop.f32.mrb[0].mxu0
        %v504 = vadd.f32 %v453, %v503
        %v505 = vpop.f32.mrb[0].mxu0
        %v506 = vpop.f32.mrb[0].mxu0
        %v507 = vpop.f32.mrb[0].mxu0
        %508 = vdwg.mxu0
        %v509 = vpack.c.bf16 %v504, %v504
        %v511 = vlaneseq
        %v512 = vshrl.u32 %v511, 7
        %v513 = vsub.s32 0, %v512
        %v514 = vrot.slane %v443, %v513
        %517 = vrot.lane.b32.xlu0 %v509, 96
        %v518 = vpop.permute.xlu0 %517
        %vm519 = vcmask 130048
        %v521 = vsel %vm519, %v509, 0
        %v524 = vsel %vm519, %v518, 0
        %526 = vmatprep.subr.bf16.mxu0 0
        %527 = vmatpush1.bf16.xpose.msra.mxu0 %v524
        %528 = vmatprep.subr.bf16.mxu0 0
        %529 = vmatpush1.bf16.xpose.msra.mxu0 0
        %530 = vmatprep.subr.bf16.mxu0 0
        %531 = vmatpush1.bf16.xpose.msra.mxu0 0
        %532 = vmatprep.subr.bf16.mxu0 0
        %533 = vmatpush1.bf16.xpose.msra.mxu0 0
        %534 = vmatprep.subr.bf16.mxu0 0
        %535 = vmatpush1.bf16.xpose.msra.mxu0 0
        %536 = vmatprep.subr.bf16.mxu0 0
        %537 = vmatpush1.bf16.xpose.msra.mxu0 0
        %538 = vmatprep.subr.bf16.mxu0 0
        %539 = vmatpush1.bf16.xpose.msra.mxu0 0
        %540 = vmatprep.subr.bf16.mxu0 0
        %541 = vmatpush1.bf16.xpose.msra.mxu0 0
        %542 = vmatprep.subr.bf16.mxu0 0
        %543 = vmatpush1.bf16.xpose.msra.mxu0 0
        %544 = vmatprep.subr.bf16.mxu0 0
        %545 = vmatpush1.bf16.xpose.msra.mxu0 0
        %546 = vmatprep.subr.bf16.mxu0 0
        %547 = vmatpush1.bf16.xpose.msra.mxu0 0
        %548 = vmatprep.subr.bf16.mxu0 0
        %549 = vmatpush1.bf16.xpose.msra.mxu0 0
        %550 = vmatprep.subr.bf16.mxu0 0
        %551 = vmatpush1.bf16.xpose.msra.mxu0 0
        %552 = vmatprep.subr.bf16.mxu0 0
        %553 = vmatpush1.bf16.xpose.msra.mxu0 0
        %554 = vmatprep.subr.bf16.mxu0 0
        %555 = vmatpush1.bf16.xpose.msra.mxu0 0
        %556 = vmatprep.subr.bf16.mxu0 0
        %557 = vmatpush1.bf16.xpose.msra.mxu0 0
        %558 = vmatprep.mubr.bf16.mxu0 0
        %559 = vmatmul.mubr.bf16.gmra.mrb[0].mxu0 %v521
        %v560 = vpop.f32.mrb[0].mxu0
        %v561 = vadd.f32 %v514, %v560
        %v562 = vpop.f32.mrb[0].mxu0
        %v563 = vpop.f32.mrb[0].mxu0
        %v564 = vpop.f32.mrb[0].mxu0
        %565 = vdwg.mxu0
        %vm566 = vcmask 64512
        %v567 = vsel %vm566, %v561, -inf
        %568 = vmax.xlane.f32.xlu0 %v567
        %v569 = vpop.xlane.xlu0 %568
        %v570 = vsub.f32 %v561, %v569
        %v571 = vmul.f32 %v570, 1.442695
        %v572 = vpow.pop %v571
        %v573 = vsel %vm566, %v572, 0.0
        %574 = vadd.xlane.f32.xlu0 %v573
        %v575 = vpop.xlane.xlu0 %574
        %v576 = vrcp.pop %v575
        %v577 = vmul.f32 %v572, %v576
        %v578 = vpack.c.bf16 %v577, %v577
        %579 = vrot.lane.b32.xlu0 %v509, 64
        %v580 = vpop.permute.xlu0 %579
        %v582 = vsel %vm566, %v578, 0
        %vm584 = vcmask 1043456
        %v586 = vsel %vm584, %v580, 0
        %588 = vmatprep.subr.bf16.mxu0 0
        %589 = vmatpush1.bf16.msra.mxu0 %v586
        %590 = vmatprep.subr.bf16.mxu0 0
        %591 = vmatpush1.bf16.msra.mxu0 0
        %592 = vmatprep.subr.bf16.mxu0 0
        %593 = vmatpush1.bf16.msra.mxu0 0
        %594 = vmatprep.subr.bf16.mxu0 0
        %595 = vmatpush1.bf16.msra.mxu0 0
        %596 = vmatprep.subr.bf16.mxu0 0
        %597 = vmatpush1.bf16.msra.mxu0 0
        %598 = vmatprep.subr.bf16.mxu0 0
        %599 = vmatpush1.bf16.msra.mxu0 0
        %600 = vmatprep.subr.bf16.mxu0 0
        %601 = vmatpush1.bf16.msra.mxu0 0
        %602 = vmatprep.subr.bf16.mxu0 0
        %603 = vmatpush1.bf16.msra.mxu0 0
        %604 = vmatprep.subr.bf16.mxu0 0
        %605 = vmatpush1.bf16.msra.mxu0 0
        %606 = vmatprep.subr.bf16.mxu0 0
        %607 = vmatpush1.bf16.msra.mxu0 0
        %608 = vmatprep.subr.bf16.mxu0 0
        %609 = vmatpush1.bf16.msra.mxu0 0
        %610 = vmatprep.subr.bf16.mxu0 0
        %611 = vmatpush1.bf16.msra.mxu0 0
        %612 = vmatprep.subr.bf16.mxu0 0
        %613 = vmatpush1.bf16.msra.mxu0 0
        %614 = vmatprep.subr.bf16.mxu0 0
        %615 = vmatpush1.bf16.msra.mxu0 0
        %616 = vmatprep.subr.bf16.mxu0 0
        %617 = vmatpush1.bf16.msra.mxu0 0
        %618 = vmatprep.subr.bf16.mxu0 0
        %619 = vmatpush1.bf16.msra.mxu0 0
        %620 = vmatprep.mubr.bf16.mxu0 0
        %621 = vmatmul.mubr.bf16.gmra.mrb[0].mxu0 %v582
        %v622 = vpop.f32.mrb[0].mxu0
        %v623 = vadd.f32 0.0, %v622
        %v624 = vpop.f32.mrb[0].mxu0
        %v625 = vpop.f32.mrb[0].mxu0
        %v626 = vpop.f32.mrb[0].mxu0
        %627 = vdwg.mxu0
        %628 = vst.msk [vmem:[#allocation2] sm:$0xff] %vm519, %v623
        %629 = vrot.lane.b32.xlu0 %v509, 112
        %v630 = vpop.permute.xlu0 %629
        %631 = vrot.lane.b32.xlu0 %v509, 80
        %v632 = vpop.permute.xlu0 %631
        %v634 = vsel %vm519, %v630, 0
        %v637 = vsel %vm519, %v632, 0
        %639 = vmatprep.subr.bf16.mxu0 0
        %640 = vmatpush1.bf16.xpose.msra.mxu0 %v637
        %641 = vmatprep.subr.bf16.mxu0 0
        %642 = vmatpush1.bf16.xpose.msra.mxu0 0
        %643 = vmatprep.subr.bf16.mxu0 0
        %644 = vmatpush1.bf16.xpose.msra.mxu0 0
        %645 = vmatprep.subr.bf16.mxu0 0
        %646 = vmatpush1.bf16.xpose.msra.mxu0 0
        %647 = vmatprep.subr.bf16.mxu0 0
        %648 = vmatpush1.bf16.xpose.msra.mxu0 0
        %649 = vmatprep.subr.bf16.mxu0 0
        %650 = vmatpush1.bf16.xpose.msra.mxu0 0
        %651 = vmatprep.subr.bf16.mxu0 0
        %652 = vmatpush1.bf16.xpose.msra.mxu0 0
        %653 = vmatprep.subr.bf16.mxu0 0
        %654 = vmatpush1.bf16.xpose.msra.mxu0 0
        %655 = vmatprep.subr.bf16.mxu0 0
        %656 = vmatpush1.bf16.xpose.msra.mxu0 0
        %657 = vmatprep.subr.bf16.mxu0 0
        %658 = vmatpush1.bf16.xpose.msra.mxu0 0
        %659 = vmatprep.subr.bf16.mxu0 0
        %660 = vmatpush1.bf16.xpose.msra.mxu0 0
        %661 = vmatprep.subr.bf16.mxu0 0
        %662 = vmatpush1.bf16.xpose.msra.mxu0 0
        %663 = vmatprep.subr.bf16.mxu0 0
        %664 = vmatpush1.bf16.xpose.msra.mxu0 0
        %665 = vmatprep.subr.bf16.mxu0 0
        %666 = vmatpush1.bf16.xpose.msra.mxu0 0
        %667 = vmatprep.subr.bf16.mxu0 0
        %668 = vmatpush1.bf16.xpose.msra.mxu0 0
        %669 = vmatprep.subr.bf16.mxu0 0
        %670 = vmatpush1.bf16.xpose.msra.mxu0 0
        %671 = vmatprep.mubr.bf16.mxu0 0
        %672 = vmatmul.mubr.bf16.gmra.mrb[0].mxu0 %v634
        %v673 = vpop.f32.mrb[0].mxu0
        %v674 = vadd.f32 %v514, %v673
        %v675 = vpop.f32.mrb[0].mxu0
        %v676 = vpop.f32.mrb[0].mxu0
        %v677 = vpop.f32.mrb[0].mxu0
        %678 = vdwg.mxu0
        %v679 = vsel %vm566, %v674, -inf
        %680 = vmax.xlane.f32.xlu0 %v679
        %v681 = vpop.xlane.xlu0 %680
        %v682 = vsub.f32 %v674, %v681
        %v683 = vmul.f32 %v682, 1.442695
        %v684 = vpow.pop %v683
        %v685 = vsel %vm566, %v684, 0.0
        %686 = vadd.xlane.f32.xlu0 %v685
        %v687 = vpop.xlane.xlu0 %686
        %v688 = vrcp.pop %v687
        %v689 = vmul.f32 %v684, %v688
        %v690 = vpack.c.bf16 %v689, %v689
        %691 = vrot.lane.b32.xlu0 %v509, 48
        %v692 = vpop.permute.xlu0 %691
        %v694 = vsel %vm566, %v690, 0
        %v697 = vsel %vm584, %v692, 0
        %699 = vmatprep.subr.bf16.mxu0 0
        %700 = vmatpush1.bf16.msra.mxu0 %v697
        %701 = vmatprep.subr.bf16.mxu0 0
        %702 = vmatpush1.bf16.msra.mxu0 0
        %703 = vmatprep.subr.bf16.mxu0 0
        %704 = vmatpush1.bf16.msra.mxu0 0
        %705 = vmatprep.subr.bf16.mxu0 0
        %706 = vmatpush1.bf16.msra.mxu0 0
        %707 = vmatprep.subr.bf16.mxu0 0
        %708 = vmatpush1.bf16.msra.mxu0 0
        %709 = vmatprep.subr.bf16.mxu0 0
        %710 = vmatpush1.bf16.msra.mxu0 0
        %711 = vmatprep.subr.bf16.mxu0 0
        %712 = vmatpush1.bf16.msra.mxu0 0
        %713 = vmatprep.subr.bf16.mxu0 0
        %714 = vmatpush1.bf16.msra.mxu0 0
        %715 = vmatprep.subr.bf16.mxu0 0
        %716 = vmatpush1.bf16.msra.mxu0 0
        %717 = vmatprep.subr.bf16.mxu0 0
        %718 = vmatpush1.bf16.msra.mxu0 0
        %719 = vmatprep.subr.bf16.mxu0 0
        %720 = vmatpush1.bf16.msra.mxu0 0
        %721 = vmatprep.subr.bf16.mxu0 0
        %722 = vmatpush1.bf16.msra.mxu0 0
        %723 = vmatprep.subr.bf16.mxu0 0
        %724 = vmatpush1.bf16.msra.mxu0 0
        %725 = vmatprep.subr.bf16.mxu0 0
        %726 = vmatpush1.bf16.msra.mxu0 0
        %727 = vmatprep.subr.bf16.mxu0 0
        %728 = vmatpush1.bf16.msra.mxu0 0
        %729 = vmatprep.subr.bf16.mxu0 0
        %730 = vmatpush1.bf16.msra.mxu0 0
        %731 = vmatprep.mubr.bf16.mxu0 0
        %732 = vmatmul.mubr.bf16.gmra.mrb[0].mxu0 %v694
        %v733 = vpop.f32.mrb[0].mxu0
        %v734 = vadd.f32 0.0, %v733
        %v735 = vpop.f32.mrb[0].mxu0
        %v736 = vpop.f32.mrb[0].mxu0
        %v737 = vpop.f32.mrb[0].mxu0
        %738 = vdwg.mxu0
        %740 = vrot.lane.b32.xlu0 %v734, 16
        %v741 = vpop.permute.xlu0 %740
        %vm743 = vcmask 261248
        %744 = vst.msk [vmem:[#allocation2] sm:$0xff] %vm743, %v741
        %v745 = vld [vmem:[#allocation2] sm:$0xff]
        %v746 = vpack.c.bf16 %v745, %v745
        %v747 = vld [vmem:[%s4] sm:$0xf]
        %v748 = vld [vmem:[%s4 + $0x4] sm:$0xf]
        %v749 = vld [vmem:[%s4 + $0x8] sm:$0xf]
        %v750 = vld [vmem:[%s4 + $0xc] sm:$0xf]
        %v751 = vld [vmem:[%s10 + $0x6] sm:$0x1]
        %v752 = vlaneseq
        %v753 = vshrl.u32 %v752, 7
        %v754 = vsub.s32 0, %v753
        %v755 = vrot.slane %v751, %v754
        %v760 = vunpack.c.l.b16 %v747
        %v761 = vunpack.c.l.b16 %v748
        %v762 = vunpack.c.l.b16 %v749
        %v763 = vunpack.c.l.b16 %v750
        %v764 = vpack.c.b16 %v761, %v760
        %v765 = vpack.c.b16 %v763, %v762
        %v769 = vsel %vm416, %v746, 0
        %771 = vmatprep.subr.bf16.mxu0 0
        %772 = vmatpush1.bf16.msra.mxu0 %v764
        %773 = vmatprep.subr.bf16.mxu0 0
        %774 = vmatpush1.bf16.msra.mxu0 %v765
        %775 = vmatprep.subr.bf16.mxu0 0
        %776 = vmatpush1.bf16.msra.mxu0 0
        %777 = vmatprep.subr.bf16.mxu0 0
        %778 = vmatpush1.bf16.msra.mxu0 0
        %779 = vmatprep.subr.bf16.mxu0 0
        %780 = vmatpush1.bf16.msra.mxu0 0
        %781 = vmatprep.subr.bf16.mxu0 0
        %782 = vmatpush1.bf16.msra.mxu0 0
        %783 = vmatprep.subr.bf16.mxu0 0
        %784 = vmatpush1.bf16.msra.mxu0 0
        %785 = vmatprep.subr.bf16.mxu0 0
        %786 = vmatpush1.bf16.msra.mxu0 0
        %787 = vmatprep.subr.bf16.mxu0 0
        %788 = vmatpush1.bf16.msra.mxu0 0
        %789 = vmatprep.subr.bf16.mxu0 0
        %790 = vmatpush1.bf16.msra.mxu0 0
        %791 = vmatprep.subr.bf16.mxu0 0
        %792 = vmatpush1.bf16.msra.mxu0 0
        %793 = vmatprep.subr.bf16.mxu0 0
        %794 = vmatpush1.bf16.msra.mxu0 0
        %795 = vmatprep.subr.bf16.mxu0 0
        %796 = vmatpush1.bf16.msra.mxu0 0
        %797 = vmatprep.subr.bf16.mxu0 0
        %798 = vmatpush1.bf16.msra.mxu0 0
        %799 = vmatprep.subr.bf16.mxu0 0
        %800 = vmatpush1.bf16.msra.mxu0 0
        %801 = vmatprep.subr.bf16.mxu0 0
        %802 = vmatpush1.bf16.msra.mxu0 0
        %803 = vmatprep.mubr.bf16.mxu0 0
        %804 = vmatmul.mubr.bf16.gmra.mrb[0].mxu0 %v769
        %v805 = vpop.f32.mrb[0].mxu0
        %v806 = vadd.f32 %v755, %v805
        %v807 = vpop.f32.mrb[0].mxu0
        %v808 = vpop.f32.mrb[0].mxu0
        %v809 = vpop.f32.mrb[0].mxu0
        %810 = vdwg.mxu0
        %v811 = vadd.f32 %v440, %v806
        %v812 = vld [vmem:[%s10 + $0x7] sm:$0x1]
        %v813 = vld [vmem:[%s10 + $0x8] sm:$0x1]
        %v814 = vsel %vm416, %v811, 0.0
        %815 = vadd.xlane.f32.xlu0 %v814
        %v816 = vpop.xlane.xlu0 %815
        %v817 = vmul.f32 %v816, %v420
        %v818 = vsub.f32 %v811, %v817
        %v819 = vmul.f32 %v818, %v818
        %v820 = vsel %vm416, %v819, 0.0
        %821 = vadd.xlane.f32.xlu0 %v820
        %v822 = vpop.xlane.xlu0 %821
        %v823 = vmul.f32 %v822, %v420
        %v824 = vadd.f32 %v823, 1e-12
        %v825 = vrsqrt.pop %v824
        %v826 = vmul.f32 %v818, %v825
        %v827 = vlaneseq
        %v828 = vshrl.u32 %v827, 7
        %v829 = vsub.s32 0, %v828
        %v830 = vrot.slane %v812, %v829
        %v831 = vmul.f32 %v826, %v830
        %v832 = vlaneseq
        %v833 = vshrl.u32 %v832, 7
        %v834 = vsub.s32 0, %v833
        %v835 = vrot.slane %v813, %v834
        %v836 = vadd.f32 %v831, %v835
        %v837 = vpack.c.bf16 %v836, %v836
        %v838 = vld [vmem:[%s5] sm:$0xf]
        %v839 = vld [vmem:[%s5 + $0x4] sm:$0xf]
        %v840 = vld [vmem:[%s5 + $0x8] sm:$0xf]
        %v841 = vld [vmem:[%s5 + $0xc] sm:$0xf]
        %v842 = vld [vmem:[%s10 + $0x9] sm:$0x1]
        %v843 = vlaneseq
        %v844 = vshrl.u32 %v843, 7
        %v845 = vsub.s32 0, %v844
        %v846 = vrot.slane %v842, %v845
        %v851 = vunpack.c.l.b16 %v838
        %v852 = vunpack.c.l.b16 %v839
        %v853 = vunpack.c.l.b16 %v840
        %v854 = vunpack.c.l.b16 %v841
        %v855 = vpack.c.b16 %v852, %v851
        %v856 = vpack.c.b16 %v854, %v853
        %v860 = vsel %vm416, %v837, 0
        %862 = vmatprep.subr.bf16.mxu0 0
        %863 = vmatpush1.bf16.msra.mxu0 %v855
        %864 = vmatprep.subr.bf16.mxu0 0
        %865 = vmatpush1.bf16.msra.mxu0 %v856
        %866 = vmatprep.subr.bf16.mxu0 0
        %867 = vmatpush1.bf16.msra.mxu0 0
        %868 = vmatprep.subr.bf16.mxu0 0
        %869 = vmatpush1.bf16.msra.mxu0 0
        %870 = vmatprep.subr.bf16.mxu0 0
        %871 = vmatpush1.bf16.msra.mxu0 0
        %872 = vmatprep.subr.bf16.mxu0 0
        %873 = vmatpush1.bf16.msra.mxu0 0
        %874 = vmatprep.subr.bf16.mxu0 0
        %875 = vmatpush1.bf16.msra.mxu0 0
        %876 = vmatprep.subr.bf16.mxu0 0
        %877 = vmatpush1.bf16.msra.mxu0 0
        %878 = vmatprep.subr.bf16.mxu0 0
        %879 = vmatpush1.bf16.msra.mxu0 0
        %880 = vmatprep.subr.bf16.mxu0 0
        %881 = vmatpush1.bf16.msra.mxu0 0
        %882 = vmatprep.subr.bf16.mxu0 0
        %883 = vmatpush1.bf16.msra.mxu0 0
        %884 = vmatprep.subr.bf16.mxu0 0
        %885 = vmatpush1.bf16.msra.mxu0 0
        %886 = vmatprep.subr.bf16.mxu0 0
        %887 = vmatpush1.bf16.msra.mxu0 0
        %888 = vmatprep.subr.bf16.mxu0 0
        %889 = vmatpush1.bf16.msra.mxu0 0
        %890 = vmatprep.subr.bf16.mxu0 0
        %891 = vmatpush1.bf16.msra.mxu0 0
        %892 = vmatprep.subr.bf16.mxu0 0
        %893 = vmatpush1.bf16.msra.mxu0 0
        %894 = vmatprep.mubr.bf16.mxu0 0
        %895 = vmatmul.mubr.bf16.gmra.mrb[0].mxu0 %v860
        %v896 = vpop.f32.mrb[0].mxu0
        %v897 = vadd.f32 %v846, %v896
        %v898 = vpop.f32.mrb[0].mxu0
        %v899 = vpop.f32.mrb[0].mxu0
        %v900 = vpop.f32.mrb[0].mxu0
        %901 = vdwg.mxu0
        %v902 = vmul.f32 %v897, 0.5
        %v903 = vmul.f32 %v897, 0.70710677
        %v904 = vand.u32 2147483647, %v903
        %v905 = vmul.f32 %v904, 0.3275911
        %v906 = vadd.f32 %v905, 1.0
        %v907 = vrcp.pop %v906
        %v908 = vmul.f32 1.0, %v907
        %v909 = vmul.f32 %v908, 1.0614054
        %v910 = vadd.f32 %v909, -1.4531521
        %v911 = vmul.f32 %v910, %v908
        %v912 = vadd.f32 %v911, 1.4214138
        %v913 = vmul.f32 %v912, %v908
        %v914 = vadd.f32 %v913, -0.28449672
        %v915 = vmul.f32 %v914, %v908
        %v916 = vadd.f32 %v915, 0.2548296
        %v917 = vmul.f32 %v916, %v908
        %v918 = vsub.f32 0.0, %v904
        %v919 = vmul.f32 %v918, %v904
        %v920 = vmul.f32 %v919, 1.442695
        %v921 = vpow.pop %v920
        %v922 = vmul.f32 %v917, %v921
        %v923 = vsub.f32 1.0, %v922
        %vm924 = vcmp.lt.f32.partialorder %v903, 0.0
        %v925 = vsub.f32 0.0, %v923
        %v926 = vsel %vm924, %v925, %v923
        %v927 = vadd.f32 %v926, 1.0
        %v928 = vmul.f32 %v902, %v927
        %v929 = vpack.c.bf16 %v928, %v928
        %v930 = vld [vmem:[%s6] sm:$0xf]
        %v931 = vld [vmem:[%s6 + $0x4] sm:$0xf]
        %v932 = vld [vmem:[%s6 + $0x8] sm:$0xf]
        %v933 = vld [vmem:[%s6 + $0xc] sm:$0xf]
        %v934 = vld [vmem:[%s6 + $0x10] sm:$0xf]
        %v935 = vld [vmem:[%s6 + $0x14] sm:$0xf]
        %v936 = vld [vmem:[%s6 + $0x18] sm:$0xf]
        %v937 = vld [vmem:[%s6 + $0x1c] sm:$0xf]
        %v938 = vld [vmem:[%s6 + $0x20] sm:$0xf]
        %v939 = vld [vmem:[%s6 + $0x24] sm:$0xf]
        %v940 = vld [vmem:[%s6 + $0x28] sm:$0xf]
        %v941 = vld [vmem:[%s6 + $0x2c] sm:$0xf]
        %v942 = vld [vmem:[%s6 + $0x30] sm:$0xf]
        %v943 = vld [vmem:[%s6 + $0x34] sm:$0xf]
        %v944 = vld [vmem:[%s6 + $0x38] sm:$0xf]
        %v945 = vld [vmem:[%s6 + $0x3c] sm:$0xf]
        %v946 = vld [vmem:[%s10 + $0xa] sm:$0x1]
        %v947 = vlaneseq
        %v948 = vshrl.u32 %v947, 7
        %v949 = vsub.s32 0, %v948
        %v950 = vrot.slane %v946, %v949
        %v967 = vunpack.c.l.b16 %v930
        %v968 = vunpack.c.l.b16 %v931
        %v969 = vunpack.c.l.b16 %v932
        %v970 = vunpack.c.l.b16 %v933
        %v971 = vunpack.c.l.b16 %v934
        %v972 = vunpack.c.l.b16 %v935
        %v973 = vunpack.c.l.b16 %v936
        %v974 = vunpack.c.l.b16 %v937
        %v975 = vunpack.c.l.b16 %v938
        %v976 = vunpack.c.l.b16 %v939
        %v977 = vunpack.c.l.b16 %v940
        %v978 = vunpack.c.l.b16 %v941
        %v979 = vunpack.c.l.b16 %v942
        %v980 = vunpack.c.l.b16 %v943
        %v981 = vunpack.c.l.b16 %v944
        %v982 = vunpack.c.l.b16 %v945
        %v983 = vpack.c.b16 %v968, %v967
        %v984 = vpack.c.b16 %v970, %v969
        %v985 = vpack.c.b16 %v972, %v971
        %v986 = vpack.c.b16 %v974, %v973
        %v987 = vpack.c.b16 %v976, %v975
        %v988 = vpack.c.b16 %v978, %v977
        %v989 = vpack.c.b16 %v980, %v979
        %v990 = vpack.c.b16 %v982, %v981
        %999 = vmatprep.subr.bf16.mxu0 0
        %1000 = vmatpush1.bf16.msra.mxu0 %v983
        %1001 = vmatprep.subr.bf16.mxu0 0
        %1002 = vmatpush1.bf16.msra.mxu0 %v984
        %1003 = vmatprep.subr.bf16.mxu0 0
        %1004 = vmatpush1.bf16.msra.mxu0 %v985
        %1005 = vmatprep.subr.bf16.mxu0 0
        %1006 = vmatpush1.bf16.msra.mxu0 %v986
        %1007 = vmatprep.subr.bf16.mxu0 0
        %1008 = vmatpush1.bf16.msra.mxu0 %v987
        %1009 = vmatprep.subr.bf16.mxu0 0
        %1010 = vmatpush1.bf16.msra.mxu0 %v988
        %1011 = vmatprep.subr.bf16.mxu0 0
        %1012 = vmatpush1.bf16.msra.mxu0 %v989
        %1013 = vmatprep.subr.bf16.mxu0 0
        %1014 = vmatpush1.bf16.msra.mxu0 %v990
        %1015 = vmatprep.subr.bf16.mxu0 0
        %1016 = vmatpush1.bf16.msra.mxu0 0
        %1017 = vmatprep.subr.bf16.mxu0 0
        %1018 = vmatpush1.bf16.msra.mxu0 0
        %1019 = vmatprep.subr.bf16.mxu0 0
        %1020 = vmatpush1.bf16.msra.mxu0 0
        %1021 = vmatprep.subr.bf16.mxu0 0
        %1022 = vmatpush1.bf16.msra.mxu0 0
        %1023 = vmatprep.subr.bf16.mxu0 0
        %1024 = vmatpush1.bf16.msra.mxu0 0
        %1025 = vmatprep.subr.bf16.mxu0 0
        %1026 = vmatpush1.bf16.msra.mxu0 0
        %1027 = vmatprep.subr.bf16.mxu0 0
        %1028 = vmatpush1.bf16.msra.mxu0 0
        %1029 = vmatprep.subr.bf16.mxu0 0
        %1030 = vmatpush1.bf16.msra.mxu0 0
        %1031 = vmatprep.mubr.bf16.mxu0 0
        %1032 = vmatmul.mubr.bf16.gmra.mrb[0].mxu0 %v929
        %v1033 = vpop.f32.mrb[0].mxu0
        %v1034 = vadd.f32 %v950, %v1033
        %v1035 = vpop.f32.mrb[0].mxu0
        %v1036 = vpop.f32.mrb[0].mxu0
        %v1037 = vpop.f32.mrb[0].mxu0
        %1038 = vdwg.mxu0
        %v1039 = vadd.f32 %v836, %v1034
        %v1040 = vld [vmem:[%s10 + $0xb] sm:$0x1]
        %v1041 = vld [vmem:[%s10 + $0xc] sm:$0x1]
        %v1042 = vsel %vm416, %v1039, 0.0
        %1043 = vadd.xlane.f32.xlu0 %v1042
        %v1044 = vpop.xlane.xlu0 %1043
        %v1045 = vmul.f32 %v1044, %v420
        %v1046 = vsub.f32 %v1039, %v1045
        %v1047 = vmul.f32 %v1046, %v1046
        %v1048 = vsel %vm416, %v1047, 0.0
        %1049 = vadd.xlane.f32.xlu0 %v1048
        %v1050 = vpop.xlane.xlu0 %1049
        %v1051 = vmul.f32 %v1050, %v420
        %v1052 = vadd.f32 %v1051, 1e-12
        %v1053 = vrsqrt.pop %v1052
        %v1054 = vmul.f32 %v1046, %v1053
        %v1055 = vlaneseq
        %v1056 = vshrl.u32 %v1055, 7
        %v1057 = vsub.s32 0, %v1056
        %v1058 = vrot.slane %v1040, %v1057
        %v1059 = vmul.f32 %v1054, %v1058
        %v1060 = vlaneseq
        %v1061 = vshrl.u32 %v1060, 7
        %v1062 = vsub.s32 0, %v1061
        %v1063 = vrot.slane %v1041, %v1062
        %v1064 = vadd.f32 %v1059, %v1063
        %v1065 = vpack.c.bf16 %v1064, %v1064
        %s1066 = scalar_lea.vmem %s3, 16
        %v1067 = vld [vmem:[%s1066] sm:$0xf]
        %v1068 = vld [vmem:[%s1066 + $0x4] sm:$0xf]
        %v1069 = vld [vmem:[%s1066 + $0x8] sm:$0xf]
        %v1070 = vld [vmem:[%s1066 + $0xc] sm:$0xf]
        %v1071 = vld [vmem:[%s10 + $0xd] sm:$0x1]
        %v1072 = vlaneseq
        %v1073 = vshrl.u32 %v1072, 7
        %v1074 = vsub.s32 0, %v1073
        %v1075 = vrot.slane %v1071, %v1074
        %v1080 = vunpack.c.l.b16 %v1067
        %v1081 = vunpack.c.l.b16 %v1068
        %v1082 = vunpack.c.l.b16 %v1069
        %v1083 = vunpack.c.l.b16 %v1070
        %v1084 = vpack.c.b16 %v1081, %v1080
        %v1085 = vpack.c.b16 %v1083, %v1082
        %v1089 = vsel %vm416, %v1065, 0
        %1091 = vmatprep.subr.bf16.mxu0 0
        %1092 = vmatpush1.bf16.msra.mxu0 %v1084
        %1093 = vmatprep.subr.bf16.mxu0 0
        %1094 = vmatpush1.bf16.msra.mxu0 %v1085
        %1095 = vmatprep.subr.bf16.mxu0 0
        %1096 = vmatpush1.bf16.msra.mxu0 0
        %1097 = vmatprep.subr.bf16.mxu0 0
        %1098 = vmatpush1.bf16.msra.mxu0 0
        %1099 = vmatprep.subr.bf16.mxu0 0
        %1100 = vmatpush1.bf16.msra.mxu0 0
        %1101 = vmatprep.subr.bf16.mxu0 0
        %1102 = vmatpush1.bf16.msra.mxu0 0
        %1103 = vmatprep.subr.bf16.mxu0 0
        %1104 = vmatpush1.bf16.msra.mxu0 0
        %1105 = vmatprep.subr.bf16.mxu0 0
        %1106 = vmatpush1.bf16.msra.mxu0 0
        %1107 = vmatprep.subr.bf16.mxu0 0
        %1108 = vmatpush1.bf16.msra.mxu0 0
        %1109 = vmatprep.subr.bf16.mxu0 0
        %1110 = vmatpush1.bf16.msra.mxu0 0
        %1111 = vmatprep.subr.bf16.mxu0 0
        %1112 = vmatpush1.bf16.msra.mxu0 0
        %1113 = vmatprep.subr.bf16.mxu0 0
        %1114 = vmatpush1.bf16.msra.mxu0 0
        %1115 = vmatprep.subr.bf16.mxu0 0
        %1116 = vmatpush1.bf16.msra.mxu0 0
        %1117 = vmatprep.subr.bf16.mxu0 0
        %1118 = vmatpush1.bf16.msra.mxu0 0
        %1119 = vmatprep.subr.bf16.mxu0 0
        %1120 = vmatpush1.bf16.msra.mxu0 0
        %1121 = vmatprep.subr.bf16.mxu0 0
        %1122 = vmatpush1.bf16.msra.mxu0 0
        %1123 = vmatprep.mubr.bf16.mxu0 0
        %1124 = vmatmul.mubr.bf16.gmra.mrb[0].mxu0 %v1089
        %v1125 = vpop.f32.mrb[0].mxu0
        %v1126 = vadd.f32 %v1075, %v1125
        %v1127 = vpop.f32.mrb[0].mxu0
        %v1128 = vpop.f32.mrb[0].mxu0
        %v1129 = vpop.f32.mrb[0].mxu0
        %1130 = vdwg.mxu0
        %v1131 = vpack.c.bf16 %v1126, %v1126
        %1133 = vrot.lane.b32.xlu0 %v1131, 96
        %v1134 = vpop.permute.xlu0 %1133
        %v1136 = vsel %vm519, %v1131, 0
        %v1139 = vsel %vm519, %v1134, 0
        %1141 = vmatprep.subr.bf16.mxu0 0
        %1142 = vmatpush1.bf16.xpose.msra.mxu0 %v1139
        %1143 = vmatprep.subr.bf16.mxu0 0
        %1144 = vmatpush1.bf16.xpose.msra.mxu0 0
        %1145 = vmatprep.subr.bf16.mxu0 0
        %1146 = vmatpush1.bf16.xpose.msra.mxu0 0
        %1147 = vmatprep.subr.bf16.mxu0 0
        %1148 = vmatpush1.bf16.xpose.msra.mxu0 0
        %1149 = vmatprep.subr.bf16.mxu0 0
        %1150 = vmatpush1.bf16.xpose.msra.mxu0 0
        %1151 = vmatprep.subr.bf16.mxu0 0
        %1152 = vmatpush1.bf16.xpose.msra.mxu0 0
        %1153 = vmatprep.subr.bf16.mxu0 0
        %1154 = vmatpush1.bf16.xpose.msra.mxu0 0
        %1155 = vmatprep.subr.bf16.mxu0 0
        %1156 = vmatpush1.bf16.xpose.msra.mxu0 0
        %1157 = vmatprep.subr.bf16.mxu0 0
        %1158 = vmatpush1.bf16.xpose.msra.mxu0 0
        %1159 = vmatprep.subr.bf16.mxu0 0
        %1160 = vmatpush1.bf16.xpose.msra.mxu0 0
        %1161 = vmatprep.subr.bf16.mxu0 0
        %1162 = vmatpush1.bf16.xpose.msra.mxu0 0
        %1163 = vmatprep.subr.bf16.mxu0 0
        %1164 = vmatpush1.bf16.xpose.msra.mxu0 0
        %1165 = vmatprep.subr.bf16.mxu0 0
        %1166 = vmatpush1.bf16.xpose.msra.mxu0 0
        %1167 = vmatprep.subr.bf16.mxu0 0
        %1168 = vmatpush1.bf16.xpose.msra.mxu0 0
        %1169 = vmatprep.subr.bf16.mxu0 0
        %1170 = vmatpush1.bf16.xpose.msra.mxu0 0
        %1171 = vmatprep.subr.bf16.mxu0 0
        %1172 = vmatpush1.bf16.xpose.msra.mxu0 0
        %1173 = vmatprep.mubr.bf16.mxu0 0
        %1174 = vmatmul.mubr.bf16.gmra.mrb[0].mxu0 %v1136
        %v1175 = vpop.f32.mrb[0].mxu0
        %v1176 = vadd.f32 %v514, %v1175
        %v1177 = vpop.f32.mrb[0].mxu0
        %v1178 = vpop.f32.mrb[0].mxu0
        %v1179 = vpop.f32.mrb[0].mxu0
        %1180 = vdwg.mxu0
        %v1181 = vsel %vm566, %v1176, -inf
        %1182 = vmax.xlane.f32.xlu0 %v1181
        %v1183 = vpop.xlane.xlu0 %1182
        %v1184 = vsub.f32 %v1176, %v1183
        %v1185 = vmul.f32 %v1184, 1.442695
        %v1186 = vpow.pop %v1185
        %v1187 = vsel %vm566, %v1186, 0.0
        %1188 = vadd.xlane.f32.xlu0 %v1187
        %v1189 = vpop.xlane.xlu0 %1188
        %v1190 = vrcp.pop %v1189
        %v1191 = vmul.f32 %v1186, %v1190
        %v1192 = vpack.c.bf16 %v1191, %v1191
        %1193 = vrot.lane.b32.xlu0 %v1131, 64
        %v1194 = vpop.permute.xlu0 %1193
        %v1196 = vsel %vm566, %v1192, 0
        %v1199 = vsel %vm584, %v1194, 0
        %1201 = vmatprep.subr.bf16.mxu0 0
        %1202 = vmatpush1.bf16.msra.mxu0 %v1199
        %1203 = vmatprep.subr.bf16.mxu0 0
        %1204 = vmatpush1.bf16.msra.mxu0 0
        %1205 = vmatprep.subr.bf16.mxu0 0
        %1206 = vmatpush1.bf16.msra.mxu0 0
        %1207 = vmatprep.subr.bf16.mxu0 0
        %1208 = vmatpush1.bf16.msra.mxu0 0
        %1209 = vmatprep.subr.bf16.mxu0 0
        %1210 = vmatpush1.bf16.msra.mxu0 0
        %1211 = vmatprep.subr.bf16.mxu0 0
        %1212 = vmatpush1.bf16.msra.mxu0 0
        %1213 = vmatprep.subr.bf16.mxu0 0
        %1214 = vmatpush1.bf16.msra.mxu0 0
        %1215 = vmatprep.subr.bf16.mxu0 0
        %1216 = vmatpush1.bf16.msra.mxu0 0
        %1217 = vmatprep.subr.bf16.mxu0 0
        %1218 = vmatpush1.bf16.msra.mxu0 0
        %1219 = vmatprep.subr.bf16.mxu0 0
        %1220 = vmatpush1.bf16.msra.mxu0 0
        %1221 = vmatprep.subr.bf16.mxu0 0
        %1222 = vmatpush1.bf16.msra.mxu0 0
        %1223 = vmatprep.subr.bf16.mxu0 0
        %1224 = vmatpush1.bf16.msra.mxu0 0
        %1225 = vmatprep.subr.bf16.mxu0 0
        %1226 = vmatpush1.bf16.msra.mxu0 0
        %1227 = vmatprep.subr.bf16.mxu0 0
        %1228 = vmatpush1.bf16.msra.mxu0 0
        %1229 = vmatprep.subr.bf16.mxu0 0
        %1230 = vmatpush1.bf16.msra.mxu0 0
        %1231 = vmatprep.subr.bf16.mxu0 0
        %1232 = vmatpush1.bf16.msra.mxu0 0
        %1233 = vmatprep.mubr.bf16.mxu0 0
        %1234 = vmatmul.mubr.bf16.gmra.mrb[0].mxu0 %v1196
        %v1235 = vpop.f32.mrb[0].mxu0
        %v1236 = vadd.f32 0.0, %v1235
        %v1237 = vpop.f32.mrb[0].mxu0
        %v1238 = vpop.f32.mrb[0].mxu0
        %v1239 = vpop.f32.mrb[0].mxu0
        %1240 = vdwg.mxu0
        %1241 = vst.msk [vmem:[#allocation2] sm:$0xff] %vm519, %v1236
        %1242 = vrot.lane.b32.xlu0 %v1131, 112
        %v1243 = vpop.permute.xlu0 %1242
        %1244 = vrot.lane.b32.xlu0 %v1131, 80
        %v1245 = vpop.permute.xlu0 %1244
        %v1247 = vsel %vm519, %v1243, 0
        %v1250 = vsel %vm519, %v1245, 0
        %1252 = vmatprep.subr.bf16.mxu0 0
        %1253 = vmatpush1.bf16.xpose.msra.mxu0 %v1250
        %1254 = vmatprep.subr.bf16.mxu0 0
        %1255 = vmatpush1.bf16.xpose.msra.mxu0 0
        %1256 = vmatprep.subr.bf16.mxu0 0
        %1257 = vmatpush1.bf16.xpose.msra.mxu0 0
        %1258 = vmatprep.subr.bf16.mxu0 0
        %1259 = vmatpush1.bf16.xpose.msra.mxu0 0
        %1260 = vmatprep.subr.bf16.mxu0 0
        %1261 = vmatpush1.bf16.xpose.msra.mxu0 0
        %1262 = vmatprep.subr.bf16.mxu0 0
        %1263 = vmatpush1.bf16.xpose.msra.mxu0 0
        %1264 = vmatprep.subr.bf16.mxu0 0
        %1265 = vmatpush1.bf16.xpose.msra.mxu0 0
        %1266 = vmatprep.subr.bf16.mxu0 0
        %1267 = vmatpush1.bf16.xpose.msra.mxu0 0
        %1268 = vmatprep.subr.bf16.mxu0 0
        %1269 = vmatpush1.bf16.xpose.msra.mxu0 0
        %1270 = vmatprep.subr.bf16.mxu0 0
        %1271 = vmatpush1.bf16.xpose.msra.mxu0 0
        %1272 = vmatprep.subr.bf16.mxu0 0
        %1273 = vmatpush1.bf16.xpose.msra.mxu0 0
        %1274 = vmatprep.subr.bf16.mxu0 0
        %1275 = vmatpush1.bf16.xpose.msra.mxu0 0
        %1276 = vmatprep.subr.bf16.mxu0 0
        %1277 = vmatpush1.bf16.xpose.msra.mxu0 0
        %1278 = vmatprep.subr.bf16.mxu0 0
        %1279 = vmatpush1.bf16.xpose.msra.mxu0 0
        %1280 = vmatprep.subr.bf16.mxu0 0
        %1281 = vmatpush1.bf16.xpose.msra.mxu0 0
        %1282 = vmatprep.subr.bf16.mxu0 0
        %1283 = vmatpush1.bf16.xpose.msra.mxu0 0
        %1284 = vmatprep.mubr.bf16.mxu0 0
        %1285 = vmatmul.mubr.bf16.gmra.mrb[0].mxu0 %v1247
        %v1286 = vpop.f32.mrb[0].mxu0
        %v1287 = vadd.f32 %v514, %v1286
        %v1288 = vpop.f32.mrb[0].mxu0
        %v1289 = vpop.f32.mrb[0].mxu0
        %v1290 = vpop.f32.mrb[0].mxu0
        %1291 = vdwg.mxu0
        %v1292 = vsel %vm566, %v1287, -inf
        %1293 = vmax.xlane.f32.xlu0 %v1292
        %v1294 = vpop.xlane.xlu0 %1293
        %v1295 = vsub.f32 %v1287, %v1294
        %v1296 = vmul.f32 %v1295, 1.442695
        %v1297 = vpow.pop %v1296
        %v1298 = vsel %vm566, %v1297, 0.0
        %1299 = vadd.xlane.f32.xlu0 %v1298
        %v1300 = vpop.xlane.xlu0 %1299
        %v1301 = vrcp.pop %v1300
        %v1302 = vmul.f32 %v1297, %v1301
        %v1303 = vpack.c.bf16 %v1302, %v1302
        %1304 = vrot.lane.b32.xlu0 %v1131, 48
        %v1305 = vpop.permute.xlu0 %1304
        %v1307 = vsel %vm566, %v1303, 0
        %v1310 = vsel %vm584, %v1305, 0
        %1312 = vmatprep.subr.bf16.mxu0 0
        %1313 = vmatpush1.bf16.msra.mxu0 %v1310
        %1314 = vmatprep.subr.bf16.mxu0 0
        %1315 = vmatpush1.bf16.msra.mxu0 0
        %1316 = vmatprep.subr.bf16.mxu0 0
        %1317 = vmatpush1.bf16.msra.mxu0 0
        %1318 = vmatprep.subr.bf16.mxu0 0
        %1319 = vmatpush1.bf16.msra.mxu0 0
        %1320 = vmatprep.subr.bf16.mxu0 0
        %1321 = vmatpush1.bf16.msra.mxu0 0
        %1322 = vmatprep.subr.bf16.mxu0 0
        %1323 = vmatpush1.bf16.msra.mxu0 0
        %1324 = vmatprep.subr.bf16.mxu0 0
        %1325 = vmatpush1.bf16.msra.mxu0 0
        %1326 = vmatprep.subr.bf16.mxu0 0
        %1327 = vmatpush1.bf16.msra.mxu0 0
        %1328 = vmatprep.subr.bf16.mxu0 0
        %1329 = vmatpush1.bf16.msra.mxu0 0
        %1330 = vmatprep.subr.bf16.mxu0 0
        %1331 = vmatpush1.bf16.msra.mxu0 0
        %1332 = vmatprep.subr.bf16.mxu0 0
        %1333 = vmatpush1.bf16.msra.mxu0 0
        %1334 = vmatprep.subr.bf16.mxu0 0
        %1335 = vmatpush1.bf16.msra.mxu0 0
        %1336 = vmatprep.subr.bf16.mxu0 0
        %1337 = vmatpush1.bf16.msra.mxu0 0
        %1338 = vmatprep.subr.bf16.mxu0 0
        %1339 = vmatpush1.bf16.msra.mxu0 0
        %1340 = vmatprep.subr.bf16.mxu0 0
        %1341 = vmatpush1.bf16.msra.mxu0 0
        %1342 = vmatprep.subr.bf16.mxu0 0
        %1343 = vmatpush1.bf16.msra.mxu0 0
        %1344 = vmatprep.mubr.bf16.mxu0 0
        %1345 = vmatmul.mubr.bf16.gmra.mrb[0].mxu0 %v1307
        %v1346 = vpop.f32.mrb[0].mxu0
        %v1347 = vadd.f32 0.0, %v1346
        %v1348 = vpop.f32.mrb[0].mxu0
        %v1349 = vpop.f32.mrb[0].mxu0
        %v1350 = vpop.f32.mrb[0].mxu0
        %1351 = vdwg.mxu0
        %1353 = vrot.lane.b32.xlu0 %v1347, 16
        %v1354 = vpop.permute.xlu0 %1353
        %1356 = vst.msk [vmem:[#allocation2] sm:$0xff] %vm743, %v1354
        %v1357 = vld [vmem:[#allocation2] sm:$0xff]
        %v1358 = vpack.c.bf16 %v1357, %v1357
        %s1359 = scalar_lea.vmem %s4, 16
        %v1360 = vld [vmem:[%s1359] sm:$0xf]
        %v1361 = vld [vmem:[%s1359 + $0x4] sm:$0xf]
        %v1362 = vld [vmem:[%s1359 + $0x8] sm:$0xf]
        %v1363 = vld [vmem:[%s1359 + $0xc] sm:$0xf]
        %v1364 = vld [vmem:[%s10 + $0xe] sm:$0x1]
        %v1365 = vlaneseq
        %v1366 = vshrl.u32 %v1365, 7
        %v1367 = vsub.s32 0, %v1366
        %v1368 = vrot.slane %v1364, %v1367
        %v1373 = vunpack.c.l.b16 %v1360
        %v1374 = vunpack.c.l.b16 %v1361
        %v1375 = vunpack.c.l.b16 %v1362
        %v1376 = vunpack.c.l.b16 %v1363
        %v1377 = vpack.c.b16 %v1374, %v1373
        %v1378 = vpack.c.b16 %v1376, %v1375
        %v1382 = vsel %vm416, %v1358, 0
        %1384 = vmatprep.subr.bf16.mxu0 0
        %1385 = vmatpush1.bf16.msra.mxu0 %v1377
        %1386 = vmatprep.subr.bf16.mxu0 0
        %1387 = vmatpush1.bf16.msra.mxu0 %v1378
        %1388 = vmatprep.subr.bf16.mxu0 0
        %1389 = vmatpush1.bf16.msra.mxu0 0
        %1390 = vmatprep.subr.bf16.mxu0 0
        %1391 = vmatpush1.bf16.msra.mxu0 0
        %1392 = vmatprep.subr.bf16.mxu0 0
        %1393 = vmatpush1.bf16.msra.mxu0 0
        %1394 = vmatprep.subr.bf16.mxu0 0
        %1395 = vmatpush1.bf16.msra.mxu0 0
        %1396 = vmatprep.subr.bf16.mxu0 0
        %1397 = vmatpush1.bf16.msra.mxu0 0
        %1398 = vmatprep.subr.bf16.mxu0 0
        %1399 = vmatpush1.bf16.msra.mxu0 0
        %1400 = vmatprep.subr.bf16.mxu0 0
        %1401 = vmatpush1.bf16.msra.mxu0 0
        %1402 = vmatprep.subr.bf16.mxu0 0
        %1403 = vmatpush1.bf16.msra.mxu0 0
        %1404 = vmatprep.subr.bf16.mxu0 0
        %1405 = vmatpush1.bf16.msra.mxu0 0
        %1406 = vmatprep.subr.bf16.mxu0 0
        %1407 = vmatpush1.bf16.msra.mxu0 0
        %1408 = vmatprep.subr.bf16.mxu0 0
        %1409 = vmatpush1.bf16.msra.mxu0 0
        %1410 = vmatprep.subr.bf16.mxu0 0
        %1411 = vmatpush1.bf16.msra.mxu0 0
        %1412 = vmatprep.subr.bf16.mxu0 0
        %1413 = vmatpush1.bf16.msra.mxu0 0
        %1414 = vmatprep.subr.bf16.mxu0 0
        %1415 = vmatpush1.bf16.msra.mxu0 0
        %1416 = vmatprep.mubr.bf16.mxu0 0
        %1417 = vmatmul.mubr.bf16.gmra.mrb[0].mxu0 %v1382
        %v1418 = vpop.f32.mrb[0].mxu0
        %v1419 = vadd.f32 %v1368, %v1418
        %v1420 = vpop.f32.mrb[0].mxu0
        %v1421 = vpop.f32.mrb[0].mxu0
        %v1422 = vpop.f32.mrb[0].mxu0
        %1423 = vdwg.mxu0
        %v1424 = vadd.f32 %v1064, %v1419
        %v1425 = vld [vmem:[%s10 + $0xf] sm:$0x1]
        %v1426 = vld [vmem:[%s10 + $0x10] sm:$0x1]
        %v1427 = vsel %vm416, %v1424, 0.0
        %1428 = vadd.xlane.f32.xlu0 %v1427
        %v1429 = vpop.xlane.xlu0 %1428
        %v1430 = vmul.f32 %v1429, %v420
        %v1431 = vsub.f32 %v1424, %v1430
        %v1432 = vmul.f32 %v1431, %v1431
        %v1433 = vsel %vm416, %v1432, 0.0
        %1434 = vadd.xlane.f32.xlu0 %v1433
        %v1435 = vpop.xlane.xlu0 %1434
        %v1436 = vmul.f32 %v1435, %v420
        %v1437 = vadd.f32 %v1436, 1e-12
        %v1438 = vrsqrt.pop %v1437
        %v1439 = vmul.f32 %v1431, %v1438
        %v1440 = vlaneseq
        %v1441 = vshrl.u32 %v1440, 7
        %v1442 = vsub.s32 0, %v1441
        %v1443 = vrot.slane %v1425, %v1442
        %v1444 = vmul.f32 %v1439, %v1443
        %v1445 = vlaneseq
        %v1446 = vshrl.u32 %v1445, 7
        %v1447 = vsub.s32 0, %v1446
        %v1448 = vrot.slane %v1426, %v1447
        %v1449 = vadd.f32 %v1444, %v1448
        %v1450 = vpack.c.bf16 %v1449, %v1449
        %s1451 = scalar_lea.vmem %s5, 16
        %v1452 = vld [vmem:[%s1451] sm:$0xf]
        %v1453 = vld [vmem:[%s1451 + $0x4] sm:$0xf]
        %v1454 = vld [vmem:[%s1451 + $0x8] sm:$0xf]
        %v1455 = vld [vmem:[%s1451 + $0xc] sm:$0xf]
        %v1456 = vld [vmem:[%s10 + $0x11] sm:$0x1]
        %v1457 = vlaneseq
        %v1458 = vshrl.u32 %v1457, 7
        %v1459 = vsub.s32 0, %v1458
        %v1460 = vrot.slane %v1456, %v1459
        %v1465 = vunpack.c.l.b16 %v1452
        %v1466 = vunpack.c.l.b16 %v1453
        %v1467 = vunpack.c.l.b16 %v1454
        %v1468 = vunpack.c.l.b16 %v1455
        %v1469 = vpack.c.b16 %v1466, %v1465
        %v1470 = vpack.c.b16 %v1468, %v1467
        %v1474 = vsel %vm416, %v1450, 0
        %1476 = vmatprep.subr.bf16.mxu0 0
        %1477 = vmatpush1.bf16.msra.mxu0 %v1469
        %1478 = vmatprep.subr.bf16.mxu0 0
        %1479 = vmatpush1.bf16.msra.mxu0 %v1470
        %1480 = vmatprep.subr.bf16.mxu0 0
        %1481 = vmatpush1.bf16.msra.mxu0 0
        %1482 = vmatprep.subr.bf16.mxu0 0
        %1483 = vmatpush1.bf16.msra.mxu0 0
        %1484 = vmatprep.subr.bf16.mxu0 0
        %1485 = vmatpush1.bf16.msra.mxu0 0
        %1486 = vmatprep.subr.bf16.mxu0 0
        %1487 = vmatpush1.bf16.msra.mxu0 0
        %1488 = vmatprep.subr.bf16.mxu0 0
        %1489 = vmatpush1.bf16.msra.mxu0 0
        %1490 = vmatprep.subr.bf16.mxu0 0
        %1491 = vmatpush1.bf16.msra.mxu0 0
        %1492 = vmatprep.subr.bf16.mxu0 0
        %1493 = vmatpush1.bf16.msra.mxu0 0
        %1494 = vmatprep.subr.bf16.mxu0 0
        %1495 = vmatpush1.bf16.msra.mxu0 0
        %1496 = vmatprep.subr.bf16.mxu0 0
        %1497 = vmatpush1.bf16.msra.mxu0 0
        %1498 = vmatprep.subr.bf16.mxu0 0
        %1499 = vmatpush1.bf16.msra.mxu0 0
        %1500 = vmatprep.subr.bf16.mxu0 0
        %1501 = vmatpush1.bf16.msra.mxu0 0
        %1502 = vmatprep.subr.bf16.mxu0 0
        %1503 = vmatpush1.bf16.msra.mxu0 0
        %1504 = vmatprep.subr.bf16.mxu0 0
        %1505 = vmatpush1.bf16.msra.mxu0 0
        %1506 = vmatprep.subr.bf16.mxu0 0
        %1507 = vmatpush1.bf16.msra.mxu0 0
        %1508 = vmatprep.mubr.bf16.mxu0 0
        %1509 = vmatmul.mubr.bf16.gmra.mrb[0].mxu0 %v1474
        %v1510 = vpop.f32.mrb[0].mxu0
        %v1511 = vadd.f32 %v1460, %v1510
        %v1512 = vpop.f32.mrb[0].mxu0
        %v1513 = vpop.f32.mrb[0].mxu0
        %v1514 = vpop.f32.mrb[0].mxu0
        %1515 = vdwg.mxu0
        %v1516 = vmul.f32 %v1511, 0.5
        %v1517 = vmul.f32 %v1511, 0.70710677
        %v1518 = vand.u32 2147483647, %v1517
        %v1519 = vmul.f32 %v1518, 0.3275911
        %v1520 = vadd.f32 %v1519, 1.0
        %v1521 = vrcp.pop %v1520
        %v1522 = vmul.f32 1.0, %v1521
        %v1523 = vmul.f32 %v1522, 1.0614054
        %v1524 = vadd.f32 %v1523, -1.4531521
        %v1525 = vmul.f32 %v1524, %v1522
        %v1526 = vadd.f32 %v1525, 1.4214138
        %v1527 = vmul.f32 %v1526, %v1522
        %v1528 = vadd.f32 %v1527, -0.28449672
        %v1529 = vmul.f32 %v1528, %v1522
        %v1530 = vadd.f32 %v1529, 0.2548296
        %v1531 = vmul.f32 %v1530, %v1522
        %v1532 = vsub.f32 0.0, %v1518
        %v1533 = vmul.f32 %v1532, %v1518
        %v1534 = vmul.f32 %v1533, 1.442695
        %v1535 = vpow.pop %v1534
        %v1536 = vmul.f32 %v1531, %v1535
        %v1537 = vsub.f32 1.0, %v1536
        %vm1538 = vcmp.lt.f32.partialorder %v1517, 0.0
        %v1539 = vsub.f32 0.0, %v1537
        %v1540 = vsel %vm1538, %v1539, %v1537
        %v1541 = vadd.f32 %v1540, 1.0
        %v1542 = vmul.f32 %v1516, %v1541
        %v1543 = vpack.c.bf16 %v1542, %v1542
        %s1544 = scalar_lea.vmem %s6, 64
        %v1545 = vld [vmem:[%s1544] sm:$0xf]
        %v1546 = vld [vmem:[%s1544 + $0x4] sm:$0xf]
        %v1547 = vld [vmem:[%s1544 + $0x8] sm:$0xf]
        %v1548 = vld [vmem:[%s1544 + $0xc] sm:$0xf]
        %v1549 = vld [vmem:[%s1544 + $0x10] sm:$0xf]
        %v1550 = vld [vmem:[%s1544 + $0x14] sm:$0xf]
        %v1551 = vld [vmem:[%s1544 + $0x18] sm:$0xf]
        %v1552 = vld [vmem:[%s1544 + $0x1c] sm:$0xf]
        %v1553 = vld [vmem:[%s1544 + $0x20] sm:$0xf]
        %v1554 = vld [vmem:[%s1544 + $0x24] sm:$0xf]
        %v1555 = vld [vmem:[%s1544 + $0x28] sm:$0xf]
        %v1556 = vld [vmem:[%s1544 + $0x2c] sm:$0xf]
        %v1557 = vld [vmem:[%s1544 + $0x30] sm:$0xf]
        %v1558 = vld [vmem:[%s1544 + $0x34] sm:$0xf]
        %v1559 = vld [vmem:[%s1544 + $0x38] sm:$0xf]
        %v1560 = vld [vmem:[%s1544 + $0x3c] sm:$0xf]
        %v1561 = vld [vmem:[%s10 + $0x12] sm:$0x1]
        %v1562 = vlaneseq
        %v1563 = vshrl.u32 %v1562, 7
        %v1564 = vsub.s32 0, %v1563
        %v1565 = vrot.slane %v1561, %v1564
        %v1582 = vunpack.c.l.b16 %v1545
        %v1583 = vunpack.c.l.b16 %v1546
        %v1584 = vunpack.c.l.b16 %v1547
        %v1585 = vunpack.c.l.b16 %v1548
        %v1586 = vunpack.c.l.b16 %v1549
        %v1587 = vunpack.c.l.b16 %v1550
        %v1588 = vunpack.c.l.b16 %v1551
        %v1589 = vunpack.c.l.b16 %v1552
        %v1590 = vunpack.c.l.b16 %v1553
        %v1591 = vunpack.c.l.b16 %v1554
        %v1592 = vunpack.c.l.b16 %v1555
        %v1593 = vunpack.c.l.b16 %v1556
        %v1594 = vunpack.c.l.b16 %v1557
        %v1595 = vunpack.c.l.b16 %v1558
        %v1596 = vunpack.c.l.b16 %v1559
        %v1597 = vunpack.c.l.b16 %v1560
        %v1598 = vpack.c.b16 %v1583, %v1582
        %v1599 = vpack.c.b16 %v1585, %v1584
        %v1600 = vpack.c.b16 %v1587, %v1586
        %v1601 = vpack.c.b16 %v1589, %v1588
        %v1602 = vpack.c.b16 %v1591, %v1590
        %v1603 = vpack.c.b16 %v1593, %v1592
        %v1604 = vpack.c.b16 %v1595, %v1594
        %v1605 = vpack.c.b16 %v1597, %v1596
        %1614 = vmatprep.subr.bf16.mxu0 0
        %1615 = vmatpush1.bf16.msra.mxu0 %v1598
        %1616 = vmatprep.subr.bf16.mxu0 0
        %1617 = vmatpush1.bf16.msra.mxu0 %v1599
        %1618 = vmatprep.subr.bf16.mxu0 0
        %1619 = vmatpush1.bf16.msra.mxu0 %v1600
        %1620 = vmatprep.subr.bf16.mxu0 0
        %1621 = vmatpush1.bf16.msra.mxu0 %v1601
        %1622 = vmatprep.subr.bf16.mxu0 0
        %1623 = vmatpush1.bf16.msra.mxu0 %v1602
        %1624 = vmatprep.subr.bf16.mxu0 0
        %1625 = vmatpush1.bf16.msra.mxu0 %v1603
        %1626 = vmatprep.subr.bf16.mxu0 0
        %1627 = vmatpush1.bf16.msra.mxu0 %v1604
        %1628 = vmatprep.subr.bf16.mxu0 0
        %1629 = vmatpush1.bf16.msra.mxu0 %v1605
        %1630 = vmatprep.subr.bf16.mxu0 0
        %1631 = vmatpush1.bf16.msra.mxu0 0
        %1632 = vmatprep.subr.bf16.mxu0 0
        %1633 = vmatpush1.bf16.msra.mxu0 0
        %1634 = vmatprep.subr.bf16.mxu0 0
        %1635 = vmatpush1.bf16.msra.mxu0 0
        %1636 = vmatprep.subr.bf16.mxu0 0
        %1637 = vmatpush1.bf16.msra.mxu0 0
        %1638 = vmatprep.subr.bf16.mxu0 0
        %1639 = vmatpush1.bf16.msra.mxu0 0
        %1640 = vmatprep.subr.bf16.mxu0 0
        %1641 = vmatpush1.bf16.msra.mxu0 0
        %1642 = vmatprep.subr.bf16.mxu0 0
        %1643 = vmatpush1.bf16.msra.mxu0 0
        %1644 = vmatprep.subr.bf16.mxu0 0
        %1645 = vmatpush1.bf16.msra.mxu0 0
        %1646 = vmatprep.mubr.bf16.mxu0 0
        %1647 = vmatmul.mubr.bf16.gmra.mrb[0].mxu0 %v1543
        %v1648 = vpop.f32.mrb[0].mxu0
        %v1649 = vadd.f32 %v1565, %v1648
        %v1650 = vpop.f32.mrb[0].mxu0
        %v1651 = vpop.f32.mrb[0].mxu0
        %v1652 = vpop.f32.mrb[0].mxu0
        %1653 = vdwg.mxu0
        %v1654 = vadd.f32 %v1449, %v1649
        %v1655 = vld [vmem:[%s10 + $0x13] sm:$0x1]
        %v1656 = vld [vmem:[%s10 + $0x14] sm:$0x1]
        %v1657 = vsel %vm416, %v1654, 0.0
        %1658 = vadd.xlane.f32.xlu0 %v1657
        %v1659 = vpop.xlane.xlu0 %1658
        %v1660 = vmul.f32 %v1659, %v420
        %v1661 = vsub.f32 %v1654, %v1660
        %v1662 = vmul.f32 %v1661, %v1661
        %v1663 = vsel %vm416, %v1662, 0.0
        %1664 = vadd.xlane.f32.xlu0 %v1663
        %v1665 = vpop.xlane.xlu0 %1664
        %v1666 = vmul.f32 %v1665, %v420
        %v1667 = vadd.f32 %v1666, 1e-12
        %v1668 = vrsqrt.pop %v1667
        %v1669 = vmul.f32 %v1661, %v1668
        %v1670 = vlaneseq
        %v1671 = vshrl.u32 %v1670, 7
        %v1672 = vsub.s32 0, %v1671
        %v1673 = vrot.slane %v1655, %v1672
        %v1674 = vmul.f32 %v1669, %v1673
        %v1675 = vlaneseq
        %v1676 = vshrl.u32 %v1675, 7
        %v1677 = vsub.s32 0, %v1676
        %v1678 = vrot.slane %v1656, %v1677
        %v1679 = vadd.f32 %v1674, %v1678
        %v1680 = vpack.c.bf16 %v1679, %v1679
        %v1681 = vld [vmem:[%s7] sm:$0xf]
        %v1682 = vld [vmem:[%s7 + $0x4] sm:$0xf]
        %v1683 = vld [vmem:[%s7 + $0x8] sm:$0xf]
        %v1684 = vld [vmem:[%s7 + $0xc] sm:$0xf]
        %v1685 = vld [vmem:[%s10 + $0x2] sm:$0x1]
        %v1690 = vunpack.c.l.b16 %v1681
        %v1691 = vunpack.c.l.b16 %v1682
        %v1692 = vunpack.c.l.b16 %v1683
        %v1693 = vunpack.c.l.b16 %v1684
        %v1694 = vpack.c.b16 %v1691, %v1690
        %v1695 = vpack.c.b16 %v1693, %v1692
        %v1699 = vsel %vm416, %v1680, 0
        %1701 = vmatprep.subr.bf16.mxu0 0
        %1702 = vmatpush1.bf16.msra.mxu0 %v1694
        %1703 = vmatprep.subr.bf16.mxu0 0
        %1704 = vmatpush1.bf16.msra.mxu0 %v1695
        %1705 = vmatprep.subr.bf16.mxu0 0
        %1706 = vmatpush1.bf16.msra.mxu0 0
        %1707 = vmatprep.subr.bf16.mxu0 0
        %1708 = vmatpush1.bf16.msra.mxu0 0
        %1709 = vmatprep.subr.bf16.mxu0 0
        %1710 = vmatpush1.bf16.msra.mxu0 0
        %1711 = vmatprep.subr.bf16.mxu0 0
        %1712 = vmatpush1.bf16.msra.mxu0 0
        %1713 = vmatprep.subr.bf16.mxu0 0
        %1714 = vmatpush1.bf16.msra.mxu0 0
        %1715 = vmatprep.subr.bf16.mxu0 0
        %1716 = vmatpush1.bf16.msra.mxu0 0
        %1717 = vmatprep.subr.bf16.mxu0 0
        %1718 = vmatpush1.bf16.msra.mxu0 0
        %1719 = vmatprep.subr.bf16.mxu0 0
        %1720 = vmatpush1.bf16.msra.mxu0 0
        %1721 = vmatprep.subr.bf16.mxu0 0
        %1722 = vmatpush1.bf16.msra.mxu0 0
        %1723 = vmatprep.subr.bf16.mxu0 0
        %1724 = vmatpush1.bf16.msra.mxu0 0
        %1725 = vmatprep.subr.bf16.mxu0 0
        %1726 = vmatpush1.bf16.msra.mxu0 0
        %1727 = vmatprep.subr.bf16.mxu0 0
        %1728 = vmatpush1.bf16.msra.mxu0 0
        %1729 = vmatprep.subr.bf16.mxu0 0
        %1730 = vmatpush1.bf16.msra.mxu0 0
        %1731 = vmatprep.subr.bf16.mxu0 0
        %1732 = vmatpush1.bf16.msra.mxu0 0
        %1733 = vmatprep.mubr.bf16.mxu0 0
        %1734 = vmatmul.mubr.bf16.gmra.mrb[0].mxu0 %v1699
        %v1735 = vpop.f32.mrb[0].mxu0
        %v1736 = vadd.f32 %v1685, %v1735
        %v1737 = vpop.f32.mrb[0].mxu0
        %v1738 = vpop.f32.mrb[0].mxu0
        %v1739 = vpop.f32.mrb[0].mxu0
        %1740 = vdwg.mxu0
        %v1741 = vtanh.pop %v1736
        %v1742 = vpack.c.bf16 %v1741, %v1741
        %v1743 = vld [vmem:[%s8] sm:$0xf]
        %v1744 = vld [vmem:[%s8 + $0x4] sm:$0xf]
        %v1745 = vld [vmem:[%s8 + $0x8] sm:$0xf]
        %v1746 = vld [vmem:[%s8 + $0xc] sm:$0xf]
        %v1747 = vld [vmem:[%s10 + $0x3] sm:$0x1]
        %v1752 = vunpack.c.l.b16 %v1743
        %v1753 = vunpack.c.l.b16 %v1744
        %v1754 = vunpack.c.l.b16 %v1745
        %v1755 = vunpack.c.l.b16 %v1746
        %v1756 = vpack.c.b16 %v1753, %v1752
        %v1757 = vpack.c.b16 %v1755, %v1754
        %v1761 = vsel %vm416, %v1742, 0
        %1763 = vmatprep.subr.bf16.mxu0 0
        %1764 = vmatpush1.bf16.msra.mxu0 %v1756
        %1765 = vmatprep.subr.bf16.mxu0 0
        %1766 = vmatpush1.bf16.msra.mxu0 %v1757
        %1767 = vmatprep.subr.bf16.mxu0 0
        %1768 = vmatpush1.bf16.msra.mxu0 0
        %1769 = vmatprep.subr.bf16.mxu0 0
        %1770 = vmatpush1.bf16.msra.mxu0 0
        %1771 = vmatprep.subr.bf16.mxu0 0
        %1772 = vmatpush1.bf16.msra.mxu0 0
        %1773 = vmatprep.subr.bf16.mxu0 0
        %1774 = vmatpush1.bf16.msra.mxu0 0
        %1775 = vmatprep.subr.bf16.mxu0 0
        %1776 = vmatpush1.bf16.msra.mxu0 0
        %1777 = vmatprep.subr.bf16.mxu0 0
        %1778 = vmatpush1.bf16.msra.mxu0 0
        %1779 = vmatprep.subr.bf16.mxu0 0
        %1780 = vmatpush1.bf16.msra.mxu0 0
        %1781 = vmatprep.subr.bf16.mxu0 0
        %1782 = vmatpush1.bf16.msra.mxu0 0
        %1783 = vmatprep.subr.bf16.mxu0 0
        %1784 = vmatpush1.bf16.msra.mxu0 0
        %1785 = vmatprep.subr.bf16.mxu0 0
        %1786 = vmatpush1.bf16.msra.mxu0 0
        %1787 = vmatprep.subr.bf16.mxu0 0
        %1788 = vmatpush1.bf16.msra.mxu0 0
        %1789 = vmatprep.subr.bf16.mxu0 0
        %1790 = vmatpush1.bf16.msra.mxu0 0
        %1791 = vmatprep.subr.bf16.mxu0 0
        %1792 = vmatpush1.bf16.msra.mxu0 0
        %1793 = vmatprep.subr.bf16.mxu0 0
        %1794 = vmatpush1.bf16.msra.mxu0 0
        %1795 = vmatprep.mubr.bf16.mxu0 0
        %1796 = vmatmul.mubr.bf16.gmra.mrb[0].mxu0 %v1761
        %v1797 = vpop.f32.mrb[0].mxu0
        %v1798 = vadd.f32 %v1747, %v1797
        %v1799 = vpop.f32.mrb[0].mxu0
        %v1800 = vpop.f32.mrb[0].mxu0
        %v1801 = vpop.f32.mrb[0].mxu0
        %1802 = vdwg.mxu0
        %v1803 = vmax.f32 %v1798, 0.0
        %v1804 = vpack.c.bf16 %v1803, %v1803
        %v1805 = vld [vmem:[%s9] sm:$0xf]
        %v1806 = vld [vmem:[%s9 + $0x4] sm:$0xf]
        %v1807 = vld [vmem:[%s9 + $0x8] sm:$0xf]
        %v1808 = vld [vmem:[%s9 + $0xc] sm:$0xf]
        %v1809 = vld [vmem:[%s10 + $0x4] sm:$0x1]
        %v1814 = vunpack.c.l.b16 %v1805
        %v1815 = vunpack.c.l.b16 %v1806
        %v1816 = vunpack.c.l.b16 %v1807
        %v1817 = vunpack.c.l.b16 %v1808
        %v1818 = vpack.c.b16 %v1815, %v1814
        %v1819 = vpack.c.b16 %v1817, %v1816
        %v1823 = vsel %vm416, %v1804, 0
        %1825 = vmatprep.subr.bf16.mxu0 0
        %1826 = vmatpush1.bf16.msra.mxu0 %v1818
        %1827 = vmatprep.subr.bf16.mxu0 0
        %1828 = vmatpush1.bf16.msra.mxu0 %v1819
        %1829 = vmatprep.subr.bf16.mxu0 0
        %1830 = vmatpush1.bf16.msra.mxu0 0
        %1831 = vmatprep.subr.bf16.mxu0 0
        %1832 = vmatpush1.bf16.msra.mxu0 0
        %1833 = vmatprep.subr.bf16.mxu0 0
        %1834 = vmatpush1.bf16.msra.mxu0 0
        %1835 = vmatprep.subr.bf16.mxu0 0
        %1836 = vmatpush1.bf16.msra.mxu0 0
        %1837 = vmatprep.subr.bf16.mxu0 0
        %1838 = vmatpush1.bf16.msra.mxu0 0
        %1839 = vmatprep.subr.bf16.mxu0 0
        %1840 = vmatpush1.bf16.msra.mxu0 0
        %1841 = vmatprep.subr.bf16.mxu0 0
        %1842 = vmatpush1.bf16.msra.mxu0 0
        %1843 = vmatprep.subr.bf16.mxu0 0
        %1844 = vmatpush1.bf16.msra.mxu0 0
        %1845 = vmatprep.subr.bf16.mxu0 0
        %1846 = vmatpush1.bf16.msra.mxu0 0
        %1847 = vmatprep.subr.bf16.mxu0 0
        %1848 = vmatpush1.bf16.msra.mxu0 0
        %1849 = vmatprep.subr.bf16.mxu0 0
        %1850 = vmatpush1.bf16.msra.mxu0 0
        %1851 = vmatprep.subr.bf16.mxu0 0
        %1852 = vmatpush1.bf16.msra.mxu0 0
        %1853 = vmatprep.subr.bf16.mxu0 0
        %1854 = vmatpush1.bf16.msra.mxu0 0
        %1855 = vmatprep.subr.bf16.mxu0 0
        %1856 = vmatpush1.bf16.msra.mxu0 0
        %1857 = vmatprep.mubr.bf16.mxu0 0
        %1858 = vmatmul.mubr.bf16.gmra.mrb[0].mxu0 %v1823
        %v1859 = vpop.f32.mrb[0].mxu0
        %v1860 = vadd.f32 %v1809, %v1859
        %v1861 = vpop.f32.mrb[0].mxu0
        %v1862 = vpop.f32.mrb[0].mxu0
        %v1863 = vpop.f32.mrb[0].mxu0
        %1864 = vdwg.mxu0
        %1865 = vst [vmem:[%s400] sm:$0x1] %v1860
        %s1866 = sand.u32 %s279, 1
        %s1867 = scalar_lea.sflag [#allocation4], %s1866
        %s1868 = sand.u32 %s279, 1
        %s1869 = scalar_lea.vmem [#allocation3], %s1868
        // Predicated region
        $region65: #{clf_model_forward.1} parent=63 // pred_check
          %p1870 = pneg %p289
        $region66: #{clf_model_forward.1} parent=63 // pred_check_branch
          %1872 = sbr.rel (%p1870) target = $region68
        $region67: #{clf_model_forward.1} parent=63 // pred_region
          %s1874 = ssub.s32 16, 16
          %1875 = vsyncadd %s1867, %s1874
          %s1876 = smul.addr %s25, 16
          %s1877 = scalar_lea.hbm %s11, %s1876
          %s1879 = sshll.u32 %s1869, 4
          %s1880 = int_to_ptr.vmem [resolvable:$true] %s1879
          %1882 = dma.vmem_to_hbm [thread:$0]  %s1880, 16, %s1877, %s1867
        $region68: #{clf_model_forward.1} parent=63 // pred_fallthru
          _
      $region64: #{clf_model_forward.1} parent=5 // pred_fallthru
        _
      %p1883 = scmp.le.s32.totalorder 2, %s20
      // Predicated region
      $region69: #{clf_model_forward.1} parent=5 // pred_check
        %p1884 = pneg %p1883
      $region70: #{clf_model_forward.1} parent=5 // pred_check_branch
        %1886 = sbr.rel (%p1884) target = $region72
      $region71: #{clf_model_forward.1} parent=5 // pred_region
        %s1887 = ssub.s32 %s20, 2
        // Predicated region
        $region73: #{clf_model_forward.1} parent=71 // pred_check
          %p1888 = pneg %p295
        $region74: #{clf_model_forward.1} parent=71 // pred_check_branch
          %1890 = sbr.rel (%p1888) target = $region76
        $region75: #{clf_model_forward.1} parent=71 // pred_region
          %s1891 = sand.u32 %s280, 1
          %s1892 = scalar_lea.sflag [#allocation4], %s1891
          %s1893 = sand.u32 %s280, 1
          %s1894 = scalar_lea.vmem [#allocation3], %s1893
          %1895 = dma.done %s1892, 16
        $region76: #{clf_model_forward.1} parent=71 // pred_fallthru
          _
      $region72: #{clf_model_forward.1} parent=5 // pred_fallthru
        _
    $region6: #{clf_model_forward.1} parent=1 // loop_footer
      %s24 = sadd.s32 1, %s20
    $region7: #{clf_model_forward.1} parent=1 // loop_footer_branch
      %19 = sbr.rel target = $region3
    $region8: #{clf_model_forward.1} parent=1 // loop_exit
      _
    %1896 = vsyncpa [#allocation4], 1
    %s1897 = scalar_lea.sflag [#allocation4], 1
    %1898 = vsyncpa %s1897, 1

</llo_original>
